<compile_context>
chip_gen: v6e
topology: v6e:2x2x1
jax: 0.10.0
libtpu: 0.0.40
codegen_flags: <defaults>
</compile_context>

<pallas_src>
import math
import functools
import numpy as np
import jax
import jax.numpy as jnp
from jax.experimental import pallas as pl
from jax.experimental.pallas import tpu as pltpu

EPS = 1e-5      # nn.LayerNorm default eps
LANE = 128
SUBLANE = 8


def _round_up(n, m):
    return (n + m - 1) // m * m


# ----------------- spiral index table (static, host-side numpy) -----------------
def _make_triangle_wave(w, length):
    if w <= 1:
        return np.zeros(length, dtype=np.int32)
    base = list(range(0, w)) + list(range(w - 2, 0, -1))
    reps = length // len(base) + 1
    return np.asarray((base * reps)[:length], dtype=np.int32)


def spiral_row_idx(C, T, kernel_size):
    """row_idx[c, t]: which channel feeds position (c, t) after spiral re-indexing."""
    wave = [np.zeros(T, dtype=np.int32)]
    for w in range(1, kernel_size + 1):
        wave.append(_make_triangle_wave(w, T))
    wave = np.stack(wave, axis=0)                       # (K+1, T)
    c = np.arange(C, dtype=np.int32)
    start = np.clip(c - (kernel_size - 1), 0, None)
    win = c - start + 1
    row_idx = start[:, None] + wave[win, :]             # (C, T)
    row_idx = np.minimum(row_idx, c[:, None])
    return row_idx


# ----------------- in-kernel math helpers -----------------
def _erf(z, use_approx_recip):
    # Abramowitz & Stegun 7.1.26, |err| < 1.5e-7 -> exact-GELU semantics.
    # TODO(synk): switch to lax.erf once Mosaic has a native erf lowering.
    sgn = jnp.where(z >= 0.0, 1.0, -1.0)
    a = jnp.abs(z)
    d = 1.0 + 0.3275911 * a
    # In the bf16 production build the reciprocal rides the EUP slot (approx vrcp);
    # the f32 debug build keeps the exact divide so the 1e-4 check stays tight.
    t = pl.reciprocal(d, approx=True) if use_approx_recip else 1.0 / d
    poly = t * (0.254829592 + t * (-0.284496736 + t * (1.421413741
             + t * (-1.453152027 + t * 1.061405429))))
    return sgn * (1.0 - poly * jnp.exp(-a * a))


def _gelu_exact(h, use_approx_recip):
    return 0.5 * h * (1.0 + _erf(h * (1.0 / math.sqrt(2.0)), use_approx_recip))


# ----------------- Pallas kernel: fused Block over a tile of (batch*time) rows -----------------
def block_kernel(x_ref, m_ref, cwT_ref, cb_ref, g1_ref, bt1_ref, g2_ref, bt2_ref,
                 w1_ref, b1_ref, w2_ref, b2_ref, o_ref, *, c_real):
    f32 = jnp.float32
    mm_dt = cwT_ref.dtype                           # bf16 (production) or f32 (debug build)
    approx_eup = jnp.dtype(mm_dt) != jnp.dtype(f32)
    x = x_ref[...].astype(f32)                      # (tr, Cp); padded lanes are exactly 0
    tr, cp = x.shape
    inv_c = 1.0 / c_real

    def ln(v, g, b):
        # Padded lanes of v are exactly 0 and gamma/beta are zero-padded, so sums over
        # Cp equal sums over the real C channels and the LN output stays exactly 0 on
        # the padded lanes (the roll-based spiral gather below relies on this).
        mu = jnp.sum(v, axis=-1, keepdims=True) * inv_c
        var = jnp.sum(v * v, axis=-1, keepdims=True) * inv_c - mu * mu
        return (v - mu) * jax.lax.rsqrt(var + EPS) * g + b

    ln1 = ln(x, g1_ref[...].astype(f32), bt1_ref[...].astype(f32))

    # ---- spiral channel gather: out[r, c] = ln1[r, c - shift(t, c)], t = r mod T ----
    # Implemented as `num_shifts` XLU lane-rolls + static select masks (no MXU, no
    # materialized W_eff).  Masks are stored once per time step (S, mrows, Cp) and
    # broadcast over the `reps` sequences packed in this tile.  Wrap-around lanes of
    # the cyclic roll (c < s) and padded lanes are guaranteed masked off (asserted in
    # the wrapper) and LN1 is 0 on padded lanes -- both invariants are required.
    nshift, mrows, _ = m_ref.shape
    reps = tr // mrows                              # sequences per tile (1 in fallback path)
    g3 = ln1.reshape(reps, mrows, cp)
    acc = jnp.zeros_like(g3)
    msum = jnp.zeros((1, mrows, cp), f32)
    for s in range(1, nshift + 1):                  # static unroll over kernel_size-1 shifts
        ms = m_ref[s - 1].astype(f32)[None]         # (1, mrows, Cp)
        msum = msum + ms
        rolled = pltpu.roll(ln1, s, 1)              # rolled[r, c] = ln1[r, c - s]
        acc = acc + ms * rolled.reshape(reps, mrows, cp)
    gathered = (acc + (1.0 - msum) * g3).reshape(tr, cp)

    # ---- 1x1 conv over channels (MXU, bf16 operands, f32 accumulate) ----
    attn = jnp.dot(gathered.astype(mm_dt), cwT_ref[...],
                   preferred_element_type=f32) + cb_ref[...].astype(f32)
    x1 = x + attn

    # ---- MLP: LN2 -> Linear -> exact (erf) GELU -> Linear ----
    ln2 = ln(x1, g2_ref[...].astype(f32), bt2_ref[...].astype(f32))
    h = jnp.dot(ln2.astype(mm_dt), w1_ref[...],
                preferred_element_type=f32) + b1_ref[...].astype(f32)
    h = _gelu_exact(h, approx_eup)
    mlp = jnp.dot(h.astype(mm_dt), w2_ref[...],
                  preferred_element_type=f32) + b2_ref[...].astype(f32)
    o_ref[...] = (x1 + mlp).astype(o_ref.dtype)


# ----------------- parameter preparation (hoisted out of the forward path) -----------------
def prepare_block_params(params, *, mm_dtype=jnp.bfloat16):
    """Pad weights to lane-dense (128) shapes and cast matmul operands ONCE.

    conv_w^T / w1 / w2 are cast to `mm_dtype` (bfloat16 for the MXU-native production
    build, float32 for a bit-accurate debug build).  LN gammas/betas and biases stay
    f32 and are ZERO-padded: that zero padding keeps padded lanes at exactly 0 through
    LayerNorm, which the roll-based spiral gather in the kernel requires.
    """
    C, H = params['conv_w'].shape[0], params['w1'].shape[1]
    Cp, Hp = _round_up(C, LANE), _round_up(H, LANE)

    def pad2(a, r, c):
        return jnp.zeros((r, c), mm_dtype).at[:a.shape[0], :a.shape[1]].set(a.astype(mm_dtype))

    def padv(v, n):
        return jnp.zeros((1, n), jnp.float32).at[0, :v.shape[0]].set(v.astype(jnp.float32))

    return dict(
        C=C, H=H, Cp=Cp, Hp=Hp, mm_dtype=mm_dtype,
        cwT=pad2(params['conv_w'].T, Cp, Cp), cb=padv(params['conv_b'], Cp),
        ln1_g=padv(params['ln1_g'], Cp), ln1_b=padv(params['ln1_b'], Cp),
        ln2_g=padv(params['ln2_g'], Cp), ln2_b=padv(params['ln2_b'], Cp),
        w1=pad2(params['w1'], Cp, Hp), b1=padv(params['b1'], Hp),
        w2=pad2(params['w2'], Hp, Cp), b2=padv(params['b2'], Cp),
    )


# ----------------- wrapper -----------------
def block_forward(x, pp, row_idx, *, row_tile=512, vmem_budget=48 * 2**20):
    """Fused Block forward.

    pp:       output of prepare_block_params (padded / cast weights).
    row_tile: target (B*T) rows per grid step.  Guidance: 512-1024 on v5e/v6e
              (128 MiB VMEM), 256-384 on v7x (64 MiB physical VMEM).
    Activations may be passed in bf16 for bandwidth-bound chips (v5e); LN/residual
    math is done in f32 inside the kernel either way.
    """
    B, T, C = x.shape
    assert C == pp['C'], "params were prepared for a different n_embd"
    Cp, Hp = pp['Cp'], pp['Hp']
    mm_dtype = pp['mm_dtype']
    dt = x.dtype
    R = B * T

    # ---- static spiral shift/select tables (host numpy, no per-call XLA work) ----
    ridx = np.asarray(row_idx)                                # (C, T)
    shift = np.arange(C, dtype=np.int64)[:, None] - ridx      # (C, T), values in [0, ksize-1]
    assert shift.min() >= 0, "spiral shift table must be non-negative"
    S = max(int(shift.max()), 1)
    m_t = np.zeros((S, T, Cp), dtype=np.float32)              # one mask row per time step
    for s in range(1, S + 1):
        m_t[s - 1, :, :C] = (shift.T == s)
        # Roll wrap-around safety: mask must be 0 where c < s (lanes the cyclic roll
        # wraps) and on padded lanes c >= C.
        assert not m_t[s - 1, :, :s].any()

    # ---- VMEM footprint estimate (drives tile choice + vmem_limit_bytes) ----
    wbytes = ((Cp * Cp + Cp * Hp + Hp * Cp) * jnp.dtype(mm_dtype).itemsize
              + (7 * Cp + Hp) * 4)
    act_item = jnp.dtype(dt).itemsize

    def est_vmem(rows, mask_rows, mask_item):
        return (4 * rows * Cp * act_item              # x in + out, double-buffered
                + S * mask_rows * Cp * mask_item      # spiral masks
                + wbytes                              # weights (single-buffered)
                + rows * (6 * Cp + 3 * Hp) * 4)       # live f32 temps (ln1/x1/ln2/h/...)

    # ---- choose tiling ----
    if T % SUBLANE == 0:
        # Primary path: each tile is k whole sequences; masks stay (S, T, Cp) bf16.
        kmax = max(row_tile // T, 1)
        if B >= 2:
            kmax = min(kmax, B // 2)   # keep >= 2 grid steps so v7x megacore uses both TCs
        k = 1
        for d in range(1, B + 1):
            if B % d == 0 and d <= kmax and est_vmem(d * T, T, 2) <= vmem_budget:
                k = d
        tr, grid_r, Rp = k * T, B // k, R
        mask_arr = jnp.asarray(m_t, dtype=jnp.bfloat16)   # 2 B/elt, NOT replicated over batch
        mask_shape = (S, T, Cp)
        mask_invariant = True
        est = est_vmem(tr, T, 2)
        # TODO(synk): when B == 1 the grid has a single step (second v7x TC idle); split
        # the sequence across >= 2 tiles with a time-sliced mask BlockSpec.
    else:
        # Fallback (T not sublane-aligned): replicate masks over rows (f32).  Padded rows
        # go through rsqrt(0 + eps) and produce garbage that is sliced off below — never
        # remove the [:R] slice.
        tr = min(_round_up(row_tile, SUBLANE), _round_up(R, SUBLANE))
        Rp = _round_up(R, tr)
        grid_r = Rp // tr
        masks = np.zeros((S, Rp, Cp), dtype=np.float32)
        masks[:, :R, :] = np.tile(m_t, (1, B, 1))
        mask_arr = jnp.asarray(masks)
        mask_shape = (S, tr, Cp)
        mask_invariant = False
        est = est_vmem(tr, tr, 4)

    vmem_limit = int(min(64 * 2**20, max(32 * 2**20, 2 * est)))

    # ---- pad activations to lane-dense channels ----
    x2 = jnp.zeros((Rp, Cp), dt).at[:R, :C].set(x.reshape(R, C))

    args = (x2, mask_arr, pp['cwT'], pp['cb'], pp['ln1_g'], pp['ln1_b'],
            pp['ln2_g'], pp['ln2_b'], pp['w1'], pp['b1'], pp['w2'], pp['b2'])
    kernel = functools.partial(block_kernel, c_real=C)

    def build(single_buffer):
        def const_spec(shape):
            n = len(shape)
            if single_buffer:
                return pl.BlockSpec(shape, lambda i, _n=n: (0,) * _n,
                                    pipeline_mode=pl.Buffered(1))
            return pl.BlockSpec(shape, lambda i, _n=n: (0,) * _n)

        if mask_invariant:
            mspec = const_spec(mask_shape)
        else:
            mspec = pl.BlockSpec(mask_shape, lambda i: (0, i, 0))

        in_specs = [
            pl.BlockSpec((tr, Cp), lambda i: (i, 0)),        # activation rows
            mspec,                                           # spiral shift-select masks
            const_spec((Cp, Cp)), const_spec((1, Cp)),       # conv W^T, conv b
            const_spec((1, Cp)), const_spec((1, Cp)),        # ln_1 gamma / beta
            const_spec((1, Cp)), const_spec((1, Cp)),        # ln_2 gamma / beta
            const_spec((Cp, Hp)), const_spec((1, Hp)),       # mlp fc1 W^T, b
            const_spec((Hp, Cp)), const_spec((1, Cp)),       # mlp fc2 W^T, b
        ]
        return pl.pallas_call(
            kernel,
            out_shape=jax.ShapeDtypeStruct((Rp, Cp), dt),
            grid=(grid_r,),
            in_specs=in_specs,
            out_specs=pl.BlockSpec((tr, Cp), lambda i: (i, 0)),
            compiler_params=pltpu.CompilerParams(
                dimension_semantics=("parallel",),
                vmem_limit_bytes=vmem_limit),
        )

    try:
        out = build(True)(*args)      # grid-invariant operands single-buffered
    except Exception:
        out = build(False)(*args)     # fallback if pl.Buffered(1) is unsupported here
    return out[:R, :C].reshape(B, T, C)


# ----------------- pure-JAX reference (for correctness check) -----------------
def reference(x, p, row_idx):
    def ln(v, g, b):
        mu = v.mean(-1, keepdims=True)
        var = jnp.square(v - mu).mean(-1, keepdims=True)
        return (v - mu) / jnp.sqrt(var + EPS) * g + b
    B, T, C = x.shape
    ln1 = ln(x, p['ln1_g'], p['ln1_b'])
    idx = jnp.broadcast_to(jnp.asarray(row_idx).T[None, :, :], (B, T, C))
    Hg = jnp.take_along_axis(ln1, idx, axis=2)          # spiral gather on channels
    attn = Hg @ p['conv_w'].T + p['conv_b']             # 1x1 conv over channels
    x1 = x + attn
    ln2 = ln(x1, p['ln2_g'], p['ln2_b'])
    h = jax.nn.gelu(ln2 @ p['w1'] + p['b1'], approximate=False)
    return x1 + h @ p['w2'] + p['b2']


if __name__ == "__main__":
    B, T, C, H = 2, 8, 32, 128       # n_embd=32, mlp hidden=4*n_embd=128
    KSIZE = 3                        # SpiralAttention kernel_size
    key = jax.random.PRNGKey(0)
    ks = jax.random.split(key, 12)
    x = jax.random.normal(ks[0], (B, T, C), jnp.float32)
    params = dict(
        ln1_g=1.0 + 0.1 * jax.random.normal(ks[1], (C,), jnp.float32),
        ln1_b=0.1 * jax.random.normal(ks[2], (C,), jnp.float32),
        conv_w=jax.random.normal(ks[3], (C, C), jnp.float32) / math.sqrt(C),   # Conv1d(C,C,1).weight[:,:,0]
        conv_b=0.1 * jax.random.normal(ks[4], (C,), jnp.float32),
        ln2_g=1.0 + 0.1 * jax.random.normal(ks[5], (C,), jnp.float32),
        ln2_b=0.1 * jax.random.normal(ks[6], (C,), jnp.float32),
        w1=jax.random.normal(ks[7], (C, H), jnp.float32) / math.sqrt(C),       # Linear(C,4C).weight.T
        b1=0.1 * jax.random.normal(ks[8], (H,), jnp.float32),
        w2=jax.random.normal(ks[9], (H, C), jnp.float32) / math.sqrt(H),       # Linear(4C,C).weight.T
        b2=0.1 * jax.random.normal(ks[10], (C,), jnp.float32),
    )
    row_idx = jnp.asarray(spiral_row_idx(C, T, KSIZE), dtype=jnp.int32)
    ref = np.asarray(reference(x, params, row_idx))

    # Production build: bf16 matmul operands on the MXU (loose tolerance).
    pp_bf16 = prepare_block_params(params, mm_dtype=jnp.bfloat16)
    out_bf16 = jax.block_until_ready(block_forward(x, pp_bf16, row_idx))
    assert out_bf16.shape == (B, T, C)
    ok_bf16 = np.allclose(np.asarray(out_bf16), ref, atol=8e-2, rtol=8e-2)

    # Debug build: f32 matmul operands, exact divide in erf (tight tolerance) — validates
    # the kernel logic (spiral gather, LN, residuals, GELU) bit-tightly.
    pp_f32 = prepare_block_params(params, mm_dtype=jnp.float32)
    out_f32 = jax.block_until_ready(block_forward(x, pp_f32, row_idx))
    ok_f32 = np.allclose(np.asarray(out_f32), ref, atol=1e-4, rtol=1e-4)

    if not ok_f32:
        raise AssertionError("f32 Pallas kernel output mismatches pure-JAX reference")
    if not ok_bf16:
        raise AssertionError("bf16 Pallas kernel output outside tolerance vs pure-JAX reference")
    print("KERNEL_OK")
</pallas_src>

<mosaic_0001>
module attributes {stable_mosaic.version = 11 : i64} {
  func.func @block_kernel(%arg0: i32, %arg1: memref<8x128xf32, #tpu.memory_space<vmem>>, %arg2: memref<2x8x128xbf16, #tpu.memory_space<vmem>>, %arg3: memref<128x128xbf16, #tpu.memory_space<vmem>>, %arg4: memref<1x128xf32, #tpu.memory_space<vmem>>, %arg5: memref<1x128xf32, #tpu.memory_space<vmem>>, %arg6: memref<1x128xf32, #tpu.memory_space<vmem>>, %arg7: memref<1x128xf32, #tpu.memory_space<vmem>>, %arg8: memref<1x128xf32, #tpu.memory_space<vmem>>, %arg9: memref<128x128xbf16, #tpu.memory_space<vmem>>, %arg10: memref<1x128xf32, #tpu.memory_space<vmem>>, %arg11: memref<128x128xbf16, #tpu.memory_space<vmem>>, %arg12: memref<1x128xf32, #tpu.memory_space<vmem>>, %arg13: memref<8x128xf32, #tpu.memory_space<vmem>>) attributes {dimension_semantics = [#tpu.dimension_semantics<parallel>], iteration_bounds = array<i64: 2>, scalar_prefetch = 0 : i64, scratch_operands = 0 : i64, tpu.core_type = #tpu.core_type<tc>, window_params = [{transform_indices = @transform_0, window_bounds = array<i64: 8, 128>}, {pipeline_mode = #tpu.pipeline_mode<synchronous>, transform_indices = @transform_1, window_bounds = array<i64: 2, 8, 128>}, {pipeline_mode = #tpu.pipeline_mode<synchronous>, transform_indices = @transform_2, window_bounds = array<i64: 128, 128>}, {pipeline_mode = #tpu.pipeline_mode<synchronous>, transform_indices = @transform_3, window_bounds = array<i64: 1, 128>}, {pipeline_mode = #tpu.pipeline_mode<synchronous>, transform_indices = @transform_4, window_bounds = array<i64: 1, 128>}, {pipeline_mode = #tpu.pipeline_mode<synchronous>, transform_indices = @transform_5, window_bounds = array<i64: 1, 128>}, {pipeline_mode = #tpu.pipeline_mode<synchronous>, transform_indices = @transform_6, window_bounds = array<i64: 1, 128>}, {pipeline_mode = #tpu.pipeline_mode<synchronous>, transform_indices = @transform_7, window_bounds = array<i64: 1, 128>}, {pipeline_mode = #tpu.pipeline_mode<synchronous>, transform_indices = @transform_8, window_bounds = array<i64: 128, 128>}, {pipeline_mode = #tpu.pipeline_mode<synchronous>, transform_indices = @transform_9, window_bounds = array<i64: 1, 128>}, {pipeline_mode = #tpu.pipeline_mode<synchronous>, transform_indices = @transform_10, window_bounds = array<i64: 128, 128>}, {pipeline_mode = #tpu.pipeline_mode<synchronous>, transform_indices = @transform_11, window_bounds = array<i64: 1, 128>}, {transform_indices = @transform_12, window_bounds = array<i64: 8, 128>}]} {
    %c0 = arith.constant 0 : index
    %c0_0 = arith.constant 0 : index
    %0 = vector.load %arg1[%c0, %c0_0] : memref<8x128xf32, #tpu.memory_space<vmem>>, vector<8x128xf32>
    %c0_1 = arith.constant 0 : index
    %c0_2 = arith.constant 0 : index
    %1 = vector.load %arg5[%c0_1, %c0_2] : memref<1x128xf32, #tpu.memory_space<vmem>>, vector<1x128xf32>
    %c0_3 = arith.constant 0 : index
    %c0_4 = arith.constant 0 : index
    %2 = vector.load %arg6[%c0_3, %c0_4] : memref<1x128xf32, #tpu.memory_space<vmem>>, vector<1x128xf32>
    %cst = arith.constant dense<0.000000e+00> : vector<8xf32>
    %3 = vector.multi_reduction <add>, %0, %cst [1] : vector<8x128xf32> to vector<8xf32>
    %4 = vector.shape_cast %3 : vector<8xf32> to vector<8x1xf32>
    %cst_5 = arith.constant 3.125000e-02 : f32
    %5 = vector.broadcast %cst_5 : f32 to vector<8x1xf32>
    %6 = arith.mulf %4, %5 : vector<8x1xf32>
    %7 = arith.mulf %0, %0 : vector<8x128xf32>
    %cst_6 = arith.constant dense<0.000000e+00> : vector<8xf32>
    %8 = vector.multi_reduction <add>, %7, %cst_6 [1] : vector<8x128xf32> to vector<8xf32>
    %9 = vector.shape_cast %8 : vector<8xf32> to vector<8x1xf32>
    %cst_7 = arith.constant 3.125000e-02 : f32
    %10 = vector.broadcast %cst_7 : f32 to vector<8x1xf32>
    %11 = arith.mulf %9, %10 : vector<8x1xf32>
    %12 = arith.mulf %6, %6 : vector<8x1xf32>
    %13 = arith.subf %11, %12 : vector<8x1xf32>
    %14 = vector.broadcast %6 : vector<8x1xf32> to vector<8x128xf32>
    %15 = arith.subf %0, %14 : vector<8x128xf32>
    %cst_8 = arith.constant 9.99999974E-6 : f32
    %16 = vector.broadcast %cst_8 : f32 to vector<8x1xf32>
    %17 = arith.addf %13, %16 : vector<8x1xf32>
    %18 = math.rsqrt %17 : vector<8x1xf32>
    %19 = vector.broadcast %18 : vector<8x1xf32> to vector<8x128xf32>
    %20 = arith.mulf %15, %19 : vector<8x128xf32>
    %21 = vector.broadcast %1 : vector<1x128xf32> to vector<8x128xf32>
    %22 = arith.mulf %20, %21 : vector<8x128xf32>
    %23 = vector.broadcast %2 : vector<1x128xf32> to vector<8x128xf32>
    %24 = arith.addf %22, %23 : vector<8x128xf32>
    %25 = vector.shape_cast %24 : vector<8x128xf32> to vector<1x8x128xf32>
    %cst_9 = arith.constant 0.000000e+00 : f32
    %26 = vector.broadcast %cst_9 : f32 to vector<1x8x128xf32>
    %cst_10 = arith.constant 0.000000e+00 : f32
    %27 = vector.broadcast %cst_10 : f32 to vector<1x8x128xf32>
    %c0_11 = arith.constant 0 : index
    %c0_12 = arith.constant 0 : index
    %c0_13 = arith.constant 0 : index
    %28 = vector.load %arg2[%c0_11, %c0_12, %c0_13] : memref<2x8x128xbf16, #tpu.memory_space<vmem>>, vector<1x8x128xbf16>
    %29 = vector.shape_cast %28 : vector<1x8x128xbf16> to vector<8x128xbf16>
    %30 = arith.extf %29 : vector<8x128xbf16> to vector<8x128xf32>
    %31 = vector.shape_cast %30 : vector<8x128xf32> to vector<1x8x128xf32>
    %32 = arith.addf %27, %31 : vector<1x8x128xf32>
    %c1_i32 = arith.constant 1 : i32
    %33 = tpu.dynamic_rotate %24 by %c1_i32 dim 1 : vector<8x128xf32>, i32 -> vector<8x128xf32>
    %34 = vector.shape_cast %33 : vector<8x128xf32> to vector<1x8x128xf32>
    %35 = arith.mulf %31, %34 : vector<1x8x128xf32>
    %36 = arith.addf %26, %35 : vector<1x8x128xf32>
    %c1 = arith.constant 1 : index
    %c0_14 = arith.constant 0 : index
    %c0_15 = arith.constant 0 : index
    %37 = vector.load %arg2[%c1, %c0_14, %c0_15] : memref<2x8x128xbf16, #tpu.memory_space<vmem>>, vector<1x8x128xbf16>
    %38 = vector.shape_cast %37 : vector<1x8x128xbf16> to vector<8x128xbf16>
    %39 = arith.extf %38 : vector<8x128xbf16> to vector<8x128xf32>
    %40 = vector.shape_cast %39 : vector<8x128xf32> to vector<1x8x128xf32>
    %41 = arith.addf %32, %40 : vector<1x8x128xf32>
    %c2_i32 = arith.constant 2 : i32
    %42 = tpu.dynamic_rotate %24 by %c2_i32 dim 1 : vector<8x128xf32>, i32 -> vector<8x128xf32>
    %43 = vector.shape_cast %42 : vector<8x128xf32> to vector<1x8x128xf32>
    %44 = arith.mulf %40, %43 : vector<1x8x128xf32>
    %45 = arith.addf %36, %44 : vector<1x8x128xf32>
    %cst_16 = arith.constant 1.000000e+00 : f32
    %46 = vector.broadcast %cst_16 : f32 to vector<1x8x128xf32>
    %47 = arith.subf %46, %41 : vector<1x8x128xf32>
    %48 = arith.mulf %47, %25 : vector<1x8x128xf32>
    %49 = arith.addf %45, %48 : vector<1x8x128xf32>
    %50 = vector.shape_cast %49 : vector<1x8x128xf32> to vector<8x128xf32>
    %51 = arith.truncf %50 : vector<8x128xf32> to vector<8x128xbf16>
    %c0_17 = arith.constant 0 : index
    %c0_18 = arith.constant 0 : index
    %52 = vector.load %arg3[%c0_17, %c0_18] : memref<128x128xbf16, #tpu.memory_space<vmem>>, vector<128x128xbf16>
    %cst_19 = arith.constant dense<0.000000e+00> : vector<8x128xf32>
    %53 = tpu.matmul %51, %52, %cst_19 {dimension_numbers = #tpu.dot_dimension_numbers<[1], [0], [0], [1], [0, 0, 1, 1], [], []>} : vector<8x128xbf16>, vector<128x128xbf16>, vector<8x128xf32> -> vector<8x128xf32>
    %c0_20 = arith.constant 0 : index
    %c0_21 = arith.constant 0 : index
    %54 = vector.load %arg4[%c0_20, %c0_21] : memref<1x128xf32, #tpu.memory_space<vmem>>, vector<1x128xf32>
    %55 = vector.broadcast %54 : vector<1x128xf32> to vector<8x128xf32>
    %56 = arith.addf %53, %55 : vector<8x128xf32>
    %57 = arith.addf %0, %56 : vector<8x128xf32>
    %c0_22 = arith.constant 0 : index
    %c0_23 = arith.constant 0 : index
    %58 = vector.load %arg7[%c0_22, %c0_23] : memref<1x128xf32, #tpu.memory_space<vmem>>, vector<1x128xf32>
    %c0_24 = arith.constant 0 : index
    %c0_25 = arith.constant 0 : index
    %59 = vector.load %arg8[%c0_24, %c0_25] : memref<1x128xf32, #tpu.memory_space<vmem>>, vector<1x128xf32>
    %cst_26 = arith.constant dense<0.000000e+00> : vector<8xf32>
    %60 = vector.multi_reduction <add>, %57, %cst_26 [1] : vector<8x128xf32> to vector<8xf32>
    %61 = vector.shape_cast %60 : vector<8xf32> to vector<8x1xf32>
    %cst_27 = arith.constant 3.125000e-02 : f32
    %62 = vector.broadcast %cst_27 : f32 to vector<8x1xf32>
    %63 = arith.mulf %61, %62 : vector<8x1xf32>
    %64 = arith.mulf %57, %57 : vector<8x128xf32>
    %cst_28 = arith.constant dense<0.000000e+00> : vector<8xf32>
    %65 = vector.multi_reduction <add>, %64, %cst_28 [1] : vector<8x128xf32> to vector<8xf32>
    %66 = vector.shape_cast %65 : vector<8xf32> to vector<8x1xf32>
    %cst_29 = arith.constant 3.125000e-02 : f32
    %67 = vector.broadcast %cst_29 : f32 to vector<8x1xf32>
    %68 = arith.mulf %66, %67 : vector<8x1xf32>
    %69 = arith.mulf %63, %63 : vector<8x1xf32>
    %70 = arith.subf %68, %69 : vector<8x1xf32>
    %71 = vector.broadcast %63 : vector<8x1xf32> to vector<8x128xf32>
    %72 = arith.subf %57, %71 : vector<8x128xf32>
    %cst_30 = arith.constant 9.99999974E-6 : f32
    %73 = vector.broadcast %cst_30 : f32 to vector<8x1xf32>
    %74 = arith.addf %70, %73 : vector<8x1xf32>
    %75 = math.rsqrt %74 : vector<8x1xf32>
    %76 = vector.broadcast %75 : vector<8x1xf32> to vector<8x128xf32>
    %77 = arith.mulf %72, %76 : vector<8x128xf32>
    %78 = vector.broadcast %58 : vector<1x128xf32> to vector<8x128xf32>
    %79 = arith.mulf %77, %78 : vector<8x128xf32>
    %80 = vector.broadcast %59 : vector<1x128xf32> to vector<8x128xf32>
    %81 = arith.addf %79, %80 : vector<8x128xf32>
    %82 = arith.truncf %81 : vector<8x128xf32> to vector<8x128xbf16>
    %c0_31 = arith.constant 0 : index
    %c0_32 = arith.constant 0 : index
    %83 = vector.load %arg9[%c0_31, %c0_32] : memref<128x128xbf16, #tpu.memory_space<vmem>>, vector<128x128xbf16>
    %cst_33 = arith.constant dense<0.000000e+00> : vector<8x128xf32>
    %84 = tpu.matmul %82, %83, %cst_33 {dimension_numbers = #tpu.dot_dimension_numbers<[1], [0], [0], [1], [0, 0, 1, 1], [], []>} : vector<8x128xbf16>, vector<128x128xbf16>, vector<8x128xf32> -> vector<8x128xf32>
    %c0_34 = arith.constant 0 : index
    %c0_35 = arith.constant 0 : index
    %85 = vector.load %arg10[%c0_34, %c0_35] : memref<1x128xf32, #tpu.memory_space<vmem>>, vector<1x128xf32>
    %86 = vector.broadcast %85 : vector<1x128xf32> to vector<8x128xf32>
    %87 = arith.addf %84, %86 : vector<8x128xf32>
    %cst_36 = arith.constant 5.000000e-01 : f32
    %88 = vector.broadcast %cst_36 : f32 to vector<8x128xf32>
    %89 = arith.mulf %88, %87 : vector<8x128xf32>
    %cst_37 = arith.constant 0.707106769 : f32
    %90 = vector.broadcast %cst_37 : f32 to vector<8x128xf32>
    %91 = arith.mulf %87, %90 : vector<8x128xf32>
    %cst_38 = arith.constant 0.000000e+00 : f32
    %92 = vector.broadcast %cst_38 : f32 to vector<8x128xf32>
    %93 = arith.cmpf oge, %91, %92 : vector<8x128xf32>
    %cst_39 = arith.constant 1.000000e+00 : f32
    %cst_40 = arith.constant -1.000000e+00 : f32
    %94 = vector.broadcast %cst_39 : f32 to vector<8x128xf32>
    %95 = vector.broadcast %cst_40 : f32 to vector<8x128xf32>
    %96 = arith.select %93, %94, %95 : vector<8x128xi1>, vector<8x128xf32>
    %97 = math.absf %91 : vector<8x128xf32>
    %cst_41 = arith.constant 0.327591091 : f32
    %98 = vector.broadcast %cst_41 : f32 to vector<8x128xf32>
    %99 = arith.mulf %98, %97 : vector<8x128xf32>
    %cst_42 = arith.constant 1.000000e+00 : f32
    %100 = vector.broadcast %cst_42 : f32 to vector<8x128xf32>
    %101 = arith.addf %100, %99 : vector<8x128xf32>
    %102 = tpu.reciprocal %101 {approx = true} : vector<8x128xf32> -> vector<8x128xf32>
    %cst_43 = arith.constant 1.06140542 : f32
    %103 = vector.broadcast %cst_43 : f32 to vector<8x128xf32>
    %104 = arith.mulf %102, %103 : vector<8x128xf32>
    %cst_44 = arith.constant -1.45315206 : f32
    %105 = vector.broadcast %cst_44 : f32 to vector<8x128xf32>
    %106 = arith.addf %105, %104 : vector<8x128xf32>
    %107 = arith.mulf %102, %106 : vector<8x128xf32>
    %cst_45 = arith.constant 1.42141378 : f32
    %108 = vector.broadcast %cst_45 : f32 to vector<8x128xf32>
    %109 = arith.addf %108, %107 : vector<8x128xf32>
    %110 = arith.mulf %102, %109 : vector<8x128xf32>
    %cst_46 = arith.constant -0.284496725 : f32
    %111 = vector.broadcast %cst_46 : f32 to vector<8x128xf32>
    %112 = arith.addf %111, %110 : vector<8x128xf32>
    %113 = arith.mulf %102, %112 : vector<8x128xf32>
    %cst_47 = arith.constant 0.254829586 : f32
    %114 = vector.broadcast %cst_47 : f32 to vector<8x128xf32>
    %115 = arith.addf %114, %113 : vector<8x128xf32>
    %116 = arith.mulf %102, %115 : vector<8x128xf32>
    %cst_48 = arith.constant 0.000000e+00 : f32
    %117 = vector.broadcast %cst_48 : f32 to vector<8x128xf32>
    %118 = arith.subf %117, %97 : vector<8x128xf32>
    %119 = arith.mulf %118, %97 : vector<8x128xf32>
    %120 = math.exp %119 : vector<8x128xf32>
    %121 = arith.mulf %116, %120 : vector<8x128xf32>
    %cst_49 = arith.constant 1.000000e+00 : f32
    %122 = vector.broadcast %cst_49 : f32 to vector<8x128xf32>
    %123 = arith.subf %122, %121 : vector<8x128xf32>
    %124 = arith.mulf %96, %123 : vector<8x128xf32>
    %cst_50 = arith.constant 1.000000e+00 : f32
    %125 = vector.broadcast %cst_50 : f32 to vector<8x128xf32>
    %126 = arith.addf %125, %124 : vector<8x128xf32>
    %127 = arith.mulf %89, %126 : vector<8x128xf32>
    %128 = arith.truncf %127 : vector<8x128xf32> to vector<8x128xbf16>
    %c0_51 = arith.constant 0 : index
    %c0_52 = arith.constant 0 : index
    %129 = vector.load %arg11[%c0_51, %c0_52] : memref<128x128xbf16, #tpu.memory_space<vmem>>, vector<128x128xbf16>
    %cst_53 = arith.constant dense<0.000000e+00> : vector<8x128xf32>
    %130 = tpu.matmul %128, %129, %cst_53 {dimension_numbers = #tpu.dot_dimension_numbers<[1], [0], [0], [1], [0, 0, 1, 1], [], []>} : vector<8x128xbf16>, vector<128x128xbf16>, vector<8x128xf32> -> vector<8x128xf32>
    %c0_54 = arith.constant 0 : index
    %c0_55 = arith.constant 0 : index
    %131 = vector.load %arg12[%c0_54, %c0_55] : memref<1x128xf32, #tpu.memory_space<vmem>>, vector<1x128xf32>
    %132 = vector.broadcast %131 : vector<1x128xf32> to vector<8x128xf32>
    %133 = arith.addf %130, %132 : vector<8x128xf32>
    %134 = arith.addf %57, %133 : vector<8x128xf32>
    %c0_56 = arith.constant 0 : index
    %c0_57 = arith.constant 0 : index
    %135 = vector.load %arg13[%c0_56, %c0_57] : memref<8x128xf32, #tpu.memory_space<vmem>>, vector<8x128xf32>
    tpu.vector_store %arg13[%c0_56, %c0_57], %134 {strides = array<i32>} : memref<8x128xf32, #tpu.memory_space<vmem>>, vector<8x128xf32>,
    return
  }
  func.func @transform_0(%arg0: i32) -> (i32, i32) {
    %c0_i32 = arith.constant 0 : i32
    %c0_i32_0 = arith.constant 0 : i32
    return %arg0, %c0_i32 : i32, i32
  }
  func.func @transform_1(%arg0: i32) -> (i32, i32, i32) {
    %c0_i32 = arith.constant 0 : i32
    %c0_i32_0 = arith.constant 0 : i32
    %c0_i32_1 = arith.constant 0 : i32
    %c0_i32_2 = arith.constant 0 : i32
    return %c0_i32, %c0_i32_0, %c0_i32_1 : i32, i32, i32
  }
  func.func @transform_2(%arg0: i32) -> (i32, i32) {
    %c0_i32 = arith.constant 0 : i32
    %c0_i32_0 = arith.constant 0 : i32
    %c0_i32_1 = arith.constant 0 : i32
    return %c0_i32, %c0_i32_0 : i32, i32
  }
  func.func @transform_3(%arg0: i32) -> (i32, i32) {
    %c0_i32 = arith.constant 0 : i32
    %c0_i32_0 = arith.constant 0 : i32
    %c0_i32_1 = arith.constant 0 : i32
    return %c0_i32, %c0_i32_0 : i32, i32
  }
  func.func @transform_4(%arg0: i32) -> (i32, i32) {
    %c0_i32 = arith.constant 0 : i32
    %c0_i32_0 = arith.constant 0 : i32
    %c0_i32_1 = arith.constant 0 : i32
    return %c0_i32, %c0_i32_0 : i32, i32
  }
  func.func @transform_5(%arg0: i32) -> (i32, i32) {
    %c0_i32 = arith.constant 0 : i32
    %c0_i32_0 = arith.constant 0 : i32
    %c0_i32_1 = arith.constant 0 : i32
    return %c0_i32, %c0_i32_0 : i32, i32
  }
  func.func @transform_6(%arg0: i32) -> (i32, i32) {
    %c0_i32 = arith.constant 0 : i32
    %c0_i32_0 = arith.constant 0 : i32
    %c0_i32_1 = arith.constant 0 : i32
    return %c0_i32, %c0_i32_0 : i32, i32
  }
  func.func @transform_7(%arg0: i32) -> (i32, i32) {
    %c0_i32 = arith.constant 0 : i32
    %c0_i32_0 = arith.constant 0 : i32
    %c0_i32_1 = arith.constant 0 : i32
    return %c0_i32, %c0_i32_0 : i32, i32
  }
  func.func @transform_8(%arg0: i32) -> (i32, i32) {
    %c0_i32 = arith.constant 0 : i32
    %c0_i32_0 = arith.constant 0 : i32
    %c0_i32_1 = arith.constant 0 : i32
    return %c0_i32, %c0_i32_0 : i32, i32
  }
  func.func @transform_9(%arg0: i32) -> (i32, i32) {
    %c0_i32 = arith.constant 0 : i32
    %c0_i32_0 = arith.constant 0 : i32
    %c0_i32_1 = arith.constant 0 : i32
    return %c0_i32, %c0_i32_0 : i32, i32
  }
  func.func @transform_10(%arg0: i32) -> (i32, i32) {
    %c0_i32 = arith.constant 0 : i32
    %c0_i32_0 = arith.constant 0 : i32
    %c0_i32_1 = arith.constant 0 : i32
    return %c0_i32, %c0_i32_0 : i32, i32
  }
  func.func @transform_11(%arg0: i32) -> (i32, i32) {
    %c0_i32 = arith.constant 0 : i32
    %c0_i32_0 = arith.constant 0 : i32
    %c0_i32_1 = arith.constant 0 : i32
    return %c0_i32, %c0_i32_0 : i32, i32
  }
  func.func @transform_12(%arg0: i32) -> (i32, i32) {
    %c0_i32 = arith.constant 0 : i32
    %c0_i32_0 = arith.constant 0 : i32
    return %arg0, %c0_i32 : i32, i32
  }
}

module attributes {stable_mosaic.version = 11 : i64} {
  func.func @block_kernel(%arg0: i32, %arg1: memref<8x128xf32, #tpu.memory_space<vmem>>, %arg2: memref<2x8x128xbf16, #tpu.memory_space<vmem>>, %arg3: memref<128x128xbf16, #tpu.memory_space<vmem>>, %arg4: memref<1x128xf32, #tpu.memory_space<vmem>>, %arg5: memref<1x128xf32, #tpu.memory_space<vmem>>, %arg6: memref<1x128xf32, #tpu.memory_space<vmem>>, %arg7: memref<1x128xf32, #tpu.memory_space<vmem>>, %arg8: memref<1x128xf32, #tpu.memory_space<vmem>>, %arg9: memref<128x128xbf16, #tpu.memory_space<vmem>>, %arg10: memref<1x128xf32, #tpu.memory_space<vmem>>, %arg11: memref<128x128xbf16, #tpu.memory_space<vmem>>, %arg12: memref<1x128xf32, #tpu.memory_space<vmem>>, %arg13: memref<8x128xf32, #tpu.memory_space<vmem>>) attributes {dimension_semantics = [#tpu.dimension_semantics<parallel>], iteration_bounds = array<i64: 2>, scalar_prefetch = 0 : i64, scratch_operands = 0 : i64, tpu.core_type = #tpu.core_type<tc>, window_params = [{transform_indices = @transform_0, window_bounds = array<i64: 8, 128>}, {pipeline_mode = #tpu.pipeline_mode<synchronous>, transform_indices = @transform_1, window_bounds = array<i64: 2, 8, 128>}, {pipeline_mode = #tpu.pipeline_mode<synchronous>, transform_indices = @transform_2, window_bounds = array<i64: 128, 128>}, {pipeline_mode = #tpu.pipeline_mode<synchronous>, transform_indices = @transform_3, window_bounds = array<i64: 1, 128>}, {pipeline_mode = #tpu.pipeline_mode<synchronous>, transform_indices = @transform_4, window_bounds = array<i64: 1, 128>}, {pipeline_mode = #tpu.pipeline_mode<synchronous>, transform_indices = @transform_5, window_bounds = array<i64: 1, 128>}, {pipeline_mode = #tpu.pipeline_mode<synchronous>, transform_indices = @transform_6, window_bounds = array<i64: 1, 128>}, {pipeline_mode = #tpu.pipeline_mode<synchronous>, transform_indices = @transform_7, window_bounds = array<i64: 1, 128>}, {pipeline_mode = #tpu.pipeline_mode<synchronous>, transform_indices = @transform_8, window_bounds = array<i64: 128, 128>}, {pipeline_mode = #tpu.pipeline_mode<synchronous>, transform_indices = @transform_9, window_bounds = array<i64: 1, 128>}, {pipeline_mode = #tpu.pipeline_mode<synchronous>, transform_indices = @transform_10, window_bounds = array<i64: 128, 128>}, {pipeline_mode = #tpu.pipeline_mode<synchronous>, transform_indices = @transform_11, window_bounds = array<i64: 1, 128>}, {transform_indices = @transform_12, window_bounds = array<i64: 8, 128>}]} {
    %c0 = arith.constant 0 : index
    %c0_0 = arith.constant 0 : index
    %0 = vector.load %arg1[%c0, %c0_0] : memref<8x128xf32, #tpu.memory_space<vmem>>, vector<8x128xf32>
    %c0_1 = arith.constant 0 : index
    %c0_2 = arith.constant 0 : index
    %1 = vector.load %arg5[%c0_1, %c0_2] : memref<1x128xf32, #tpu.memory_space<vmem>>, vector<1x128xf32>
    %c0_3 = arith.constant 0 : index
    %c0_4 = arith.constant 0 : index
    %2 = vector.load %arg6[%c0_3, %c0_4] : memref<1x128xf32, #tpu.memory_space<vmem>>, vector<1x128xf32>
    %cst = arith.constant dense<0.000000e+00> : vector<8xf32>
    %3 = vector.multi_reduction <add>, %0, %cst [1] : vector<8x128xf32> to vector<8xf32>
    %4 = vector.shape_cast %3 : vector<8xf32> to vector<8x1xf32>
    %cst_5 = arith.constant 3.125000e-02 : f32
    %5 = vector.broadcast %cst_5 : f32 to vector<8x1xf32>
    %6 = arith.mulf %4, %5 : vector<8x1xf32>
    %7 = arith.mulf %0, %0 : vector<8x128xf32>
    %cst_6 = arith.constant dense<0.000000e+00> : vector<8xf32>
    %8 = vector.multi_reduction <add>, %7, %cst_6 [1] : vector<8x128xf32> to vector<8xf32>
    %9 = vector.shape_cast %8 : vector<8xf32> to vector<8x1xf32>
    %cst_7 = arith.constant 3.125000e-02 : f32
    %10 = vector.broadcast %cst_7 : f32 to vector<8x1xf32>
    %11 = arith.mulf %9, %10 : vector<8x1xf32>
    %12 = arith.mulf %6, %6 : vector<8x1xf32>
    %13 = arith.subf %11, %12 : vector<8x1xf32>
    %14 = vector.broadcast %6 : vector<8x1xf32> to vector<8x128xf32>
    %15 = arith.subf %0, %14 : vector<8x128xf32>
    %cst_8 = arith.constant 9.99999974E-6 : f32
    %16 = vector.broadcast %cst_8 : f32 to vector<8x1xf32>
    %17 = arith.addf %13, %16 : vector<8x1xf32>
    %18 = math.rsqrt %17 : vector<8x1xf32>
    %19 = vector.broadcast %18 : vector<8x1xf32> to vector<8x128xf32>
    %20 = arith.mulf %15, %19 : vector<8x128xf32>
    %21 = vector.broadcast %1 : vector<1x128xf32> to vector<8x128xf32>
    %22 = arith.mulf %20, %21 : vector<8x128xf32>
    %23 = vector.broadcast %2 : vector<1x128xf32> to vector<8x128xf32>
    %24 = arith.addf %22, %23 : vector<8x128xf32>
    %25 = vector.shape_cast %24 : vector<8x128xf32> to vector<1x8x128xf32>
    %cst_9 = arith.constant 0.000000e+00 : f32
    %26 = vector.broadcast %cst_9 : f32 to vector<1x8x128xf32>
    %cst_10 = arith.constant 0.000000e+00 : f32
    %27 = vector.broadcast %cst_10 : f32 to vector<1x8x128xf32>
    %c0_11 = arith.constant 0 : index
    %c0_12 = arith.constant 0 : index
    %c0_13 = arith.constant 0 : index
    %28 = vector.load %arg2[%c0_11, %c0_12, %c0_13] : memref<2x8x128xbf16, #tpu.memory_space<vmem>>, vector<1x8x128xbf16>
    %29 = vector.shape_cast %28 : vector<1x8x128xbf16> to vector<8x128xbf16>
    %30 = arith.extf %29 : vector<8x128xbf16> to vector<8x128xf32>
    %31 = vector.shape_cast %30 : vector<8x128xf32> to vector<1x8x128xf32>
    %32 = arith.addf %27, %31 : vector<1x8x128xf32>
    %c1_i32 = arith.constant 1 : i32
    %33 = tpu.dynamic_rotate %24 by %c1_i32 dim 1 : vector<8x128xf32>, i32 -> vector<8x128xf32>
    %34 = vector.shape_cast %33 : vector<8x128xf32> to vector<1x8x128xf32>
    %35 = arith.mulf %31, %34 : vector<1x8x128xf32>
    %36 = arith.addf %26, %35 : vector<1x8x128xf32>
    %c1 = arith.constant 1 : index
    %c0_14 = arith.constant 0 : index
    %c0_15 = arith.constant 0 : index
    %37 = vector.load %arg2[%c1, %c0_14, %c0_15] : memref<2x8x128xbf16, #tpu.memory_space<vmem>>, vector<1x8x128xbf16>
    %38 = vector.shape_cast %37 : vector<1x8x128xbf16> to vector<8x128xbf16>
    %39 = arith.extf %38 : vector<8x128xbf16> to vector<8x128xf32>
    %40 = vector.shape_cast %39 : vector<8x128xf32> to vector<1x8x128xf32>
    %41 = arith.addf %32, %40 : vector<1x8x128xf32>
    %c2_i32 = arith.constant 2 : i32
    %42 = tpu.dynamic_rotate %24 by %c2_i32 dim 1 : vector<8x128xf32>, i32 -> vector<8x128xf32>
    %43 = vector.shape_cast %42 : vector<8x128xf32> to vector<1x8x128xf32>
    %44 = arith.mulf %40, %43 : vector<1x8x128xf32>
    %45 = arith.addf %36, %44 : vector<1x8x128xf32>
    %cst_16 = arith.constant 1.000000e+00 : f32
    %46 = vector.broadcast %cst_16 : f32 to vector<1x8x128xf32>
    %47 = arith.subf %46, %41 : vector<1x8x128xf32>
    %48 = arith.mulf %47, %25 : vector<1x8x128xf32>
    %49 = arith.addf %45, %48 : vector<1x8x128xf32>
    %50 = vector.shape_cast %49 : vector<1x8x128xf32> to vector<8x128xf32>
    %51 = arith.truncf %50 : vector<8x128xf32> to vector<8x128xbf16>
    %c0_17 = arith.constant 0 : index
    %c0_18 = arith.constant 0 : index
    %52 = vector.load %arg3[%c0_17, %c0_18] : memref<128x128xbf16, #tpu.memory_space<vmem>>, vector<128x128xbf16>
    %cst_19 = arith.constant dense<0.000000e+00> : vector<8x128xf32>
    %53 = tpu.matmul %51, %52, %cst_19 {dimension_numbers = #tpu.dot_dimension_numbers<[1], [0], [0], [1], [0, 0, 1, 1], [], []>} : vector<8x128xbf16>, vector<128x128xbf16>, vector<8x128xf32> -> vector<8x128xf32>
    %c0_20 = arith.constant 0 : index
    %c0_21 = arith.constant 0 : index
    %54 = vector.load %arg4[%c0_20, %c0_21] : memref<1x128xf32, #tpu.memory_space<vmem>>, vector<1x128xf32>
    %55 = vector.broadcast %54 : vector<1x128xf32> to vector<8x128xf32>
    %56 = arith.addf %53, %55 : vector<8x128xf32>
    %57 = arith.addf %0, %56 : vector<8x128xf32>
    %c0_22 = arith.constant 0 : index
    %c0_23 = arith.constant 0 : index
    %58 = vector.load %arg7[%c0_22, %c0_23] : memref<1x128xf32, #tpu.memory_space<vmem>>, vector<1x128xf32>
    %c0_24 = arith.constant 0 : index
    %c0_25 = arith.constant 0 : index
    %59 = vector.load %arg8[%c0_24, %c0_25] : memref<1x128xf32, #tpu.memory_space<vmem>>, vector<1x128xf32>
    %cst_26 = arith.constant dense<0.000000e+00> : vector<8xf32>
    %60 = vector.multi_reduction <add>, %57, %cst_26 [1] : vector<8x128xf32> to vector<8xf32>
    %61 = vector.shape_cast %60 : vector<8xf32> to vector<8x1xf32>
    %cst_27 = arith.constant 3.125000e-02 : f32
    %62 = vector.broadcast %cst_27 : f32 to vector<8x1xf32>
    %63 = arith.mulf %61, %62 : vector<8x1xf32>
    %64 = arith.mulf %57, %57 : vector<8x128xf32>
    %cst_28 = arith.constant dense<0.000000e+00> : vector<8xf32>
    %65 = vector.multi_reduction <add>, %64, %cst_28 [1] : vector<8x128xf32> to vector<8xf32>
    %66 = vector.shape_cast %65 : vector<8xf32> to vector<8x1xf32>
    %cst_29 = arith.constant 3.125000e-02 : f32
    %67 = vector.broadcast %cst_29 : f32 to vector<8x1xf32>
    %68 = arith.mulf %66, %67 : vector<8x1xf32>
    %69 = arith.mulf %63, %63 : vector<8x1xf32>
    %70 = arith.subf %68, %69 : vector<8x1xf32>
    %71 = vector.broadcast %63 : vector<8x1xf32> to vector<8x128xf32>
    %72 = arith.subf %57, %71 : vector<8x128xf32>
    %cst_30 = arith.constant 9.99999974E-6 : f32
    %73 = vector.broadcast %cst_30 : f32 to vector<8x1xf32>
    %74 = arith.addf %70, %73 : vector<8x1xf32>
    %75 = math.rsqrt %74 : vector<8x1xf32>
    %76 = vector.broadcast %75 : vector<8x1xf32> to vector<8x128xf32>
    %77 = arith.mulf %72, %76 : vector<8x128xf32>
    %78 = vector.broadcast %58 : vector<1x128xf32> to vector<8x128xf32>
    %79 = arith.mulf %77, %78 : vector<8x128xf32>
    %80 = vector.broadcast %59 : vector<1x128xf32> to vector<8x128xf32>
    %81 = arith.addf %79, %80 : vector<8x128xf32>
    %82 = arith.truncf %81 : vector<8x128xf32> to vector<8x128xbf16>
    %c0_31 = arith.constant 0 : index
    %c0_32 = arith.constant 0 : index
    %83 = vector.load %arg9[%c0_31, %c0_32] : memref<128x128xbf16, #tpu.memory_space<vmem>>, vector<128x128xbf16>
    %cst_33 = arith.constant dense<0.000000e+00> : vector<8x128xf32>
    %84 = tpu.matmul %82, %83, %cst_33 {dimension_numbers = #tpu.dot_dimension_numbers<[1], [0], [0], [1], [0, 0, 1, 1], [], []>} : vector<8x128xbf16>, vector<128x128xbf16>, vector<8x128xf32> -> vector<8x128xf32>
    %c0_34 = arith.constant 0 : index
    %c0_35 = arith.constant 0 : index
    %85 = vector.load %arg10[%c0_34, %c0_35] : memref<1x128xf32, #tpu.memory_space<vmem>>, vector<1x128xf32>
    %86 = vector.broadcast %85 : vector<1x128xf32> to vector<8x128xf32>
    %87 = arith.addf %84, %86 : vector<8x128xf32>
    %cst_36 = arith.constant 5.000000e-01 : f32
    %88 = vector.broadcast %cst_36 : f32 to vector<8x128xf32>
    %89 = arith.mulf %88, %87 : vector<8x128xf32>
    %cst_37 = arith.constant 0.707106769 : f32
    %90 = vector.broadcast %cst_37 : f32 to vector<8x128xf32>
    %91 = arith.mulf %87, %90 : vector<8x128xf32>
    %cst_38 = arith.constant 0.000000e+00 : f32
    %92 = vector.broadcast %cst_38 : f32 to vector<8x128xf32>
    %93 = arith.cmpf oge, %91, %92 : vector<8x128xf32>
    %cst_39 = arith.constant 1.000000e+00 : f32
    %cst_40 = arith.constant -1.000000e+00 : f32
    %94 = vector.broadcast %cst_39 : f32 to vector<8x128xf32>
    %95 = vector.broadcast %cst_40 : f32 to vector<8x128xf32>
    %96 = arith.select %93, %94, %95 : vector<8x128xi1>, vector<8x128xf32>
    %97 = math.absf %91 : vector<8x128xf32>
    %cst_41 = arith.constant 0.327591091 : f32
    %98 = vector.broadcast %cst_41 : f32 to vector<8x128xf32>
    %99 = arith.mulf %98, %97 : vector<8x128xf32>
    %cst_42 = arith.constant 1.000000e+00 : f32
    %100 = vector.broadcast %cst_42 : f32 to vector<8x128xf32>
    %101 = arith.addf %100, %99 : vector<8x128xf32>
    %102 = tpu.reciprocal %101 {approx = true} : vector<8x128xf32> -> vector<8x128xf32>
    %cst_43 = arith.constant 1.06140542 : f32
    %103 = vector.broadcast %cst_43 : f32 to vector<8x128xf32>
    %104 = arith.mulf %102, %103 : vector<8x128xf32>
    %cst_44 = arith.constant -1.45315206 : f32
    %105 = vector.broadcast %cst_44 : f32 to vector<8x128xf32>
    %106 = arith.addf %105, %104 : vector<8x128xf32>
    %107 = arith.mulf %102, %106 : vector<8x128xf32>
    %cst_45 = arith.constant 1.42141378 : f32
    %108 = vector.broadcast %cst_45 : f32 to vector<8x128xf32>
    %109 = arith.addf %108, %107 : vector<8x128xf32>
    %110 = arith.mulf %102, %109 : vector<8x128xf32>
    %cst_46 = arith.constant -0.284496725 : f32
    %111 = vector.broadcast %cst_46 : f32 to vector<8x128xf32>
    %112 = arith.addf %111, %110 : vector<8x128xf32>
    %113 = arith.mulf %102, %112 : vector<8x128xf32>
    %cst_47 = arith.constant 0.254829586 : f32
    %114 = vector.broadcast %cst_47 : f32 to vector<8x128xf32>
    %115 = arith.addf %114, %113 : vector<8x128xf32>
    %116 = arith.mulf %102, %115 : vector<8x128xf32>
    %cst_48 = arith.constant 0.000000e+00 : f32
    %117 = vector.broadcast %cst_48 : f32 to vector<8x128xf32>
    %118 = arith.subf %117, %97 : vector<8x128xf32>
    %119 = arith.mulf %118, %97 : vector<8x128xf32>
    %120 = math.exp %119 : vector<8x128xf32>
    %121 = arith.mulf %116, %120 : vector<8x128xf32>
    %cst_49 = arith.constant 1.000000e+00 : f32
    %122 = vector.broadcast %cst_49 : f32 to vector<8x128xf32>
    %123 = arith.subf %122, %121 : vector<8x128xf32>
    %124 = arith.mulf %96, %123 : vector<8x128xf32>
    %cst_50 = arith.constant 1.000000e+00 : f32
    %125 = vector.broadcast %cst_50 : f32 to vector<8x128xf32>
    %126 = arith.addf %125, %124 : vector<8x128xf32>
    %127 = arith.mulf %89, %126 : vector<8x128xf32>
    %128 = arith.truncf %127 : vector<8x128xf32> to vector<8x128xbf16>
    %c0_51 = arith.constant 0 : index
    %c0_52 = arith.constant 0 : index
    %129 = vector.load %arg11[%c0_51, %c0_52] : memref<128x128xbf16, #tpu.memory_space<vmem>>, vector<128x128xbf16>
    %cst_53 = arith.constant dense<0.000000e+00> : vector<8x128xf32>
    %130 = tpu.matmul %128, %129, %cst_53 {dimension_numbers = #tpu.dot_dimension_numbers<[1], [0], [0], [1], [0, 0, 1, 1], [], []>} : vector<8x128xbf16>, vector<128x128xbf16>, vector<8x128xf32> -> vector<8x128xf32>
    %c0_54 = arith.constant 0 : index
    %c0_55 = arith.constant 0 : index
    %131 = vector.load %arg12[%c0_54, %c0_55] : memref<1x128xf32, #tpu.memory_space<vmem>>, vector<1x128xf32>
    %132 = vector.broadcast %131 : vector<1x128xf32> to vector<8x128xf32>
    %133 = arith.addf %130, %132 : vector<8x128xf32>
    %134 = arith.addf %57, %133 : vector<8x128xf32>
    %c0_56 = arith.constant 0 : index
    %c0_57 = arith.constant 0 : index
    %135 = vector.load %arg13[%c0_56, %c0_57] : memref<8x128xf32, #tpu.memory_space<vmem>>, vector<8x128xf32>
    tpu.vector_store %arg13[%c0_56, %c0_57], %134 {strides = array<i32>} : memref<8x128xf32, #tpu.memory_space<vmem>>, vector<8x128xf32>,
    return
  }
  func.func @transform_0(%arg0: i32) -> (i32, i32) {
    %c0_i32 = arith.constant 0 : i32
    %c0_i32_0 = arith.constant 0 : i32
    return %arg0, %c0_i32 : i32, i32
  }
  func.func @transform_1(%arg0: i32) -> (i32, i32, i32) {
    %c0_i32 = arith.constant 0 : i32
    %c0_i32_0 = arith.constant 0 : i32
    %c0_i32_1 = arith.constant 0 : i32
    %c0_i32_2 = arith.constant 0 : i32
    return %c0_i32, %c0_i32_0, %c0_i32_1 : i32, i32, i32
  }
  func.func @transform_2(%arg0: i32) -> (i32, i32) {
    %c0_i32 = arith.constant 0 : i32
    %c0_i32_0 = arith.constant 0 : i32
    %c0_i32_1 = arith.constant 0 : i32
    return %c0_i32, %c0_i32_0 : i32, i32
  }
  func.func @transform_3(%arg0: i32) -> (i32, i32) {
    %c0_i32 = arith.constant 0 : i32
    %c0_i32_0 = arith.constant 0 : i32
    %c0_i32_1 = arith.constant 0 : i32
    return %c0_i32, %c0_i32_0 : i32, i32
  }
  func.func @transform_4(%arg0: i32) -> (i32, i32) {
    %c0_i32 = arith.constant 0 : i32
    %c0_i32_0 = arith.constant 0 : i32
    %c0_i32_1 = arith.constant 0 : i32
    return %c0_i32, %c0_i32_0 : i32, i32
  }
  func.func @transform_5(%arg0: i32) -> (i32, i32) {
    %c0_i32 = arith.constant 0 : i32
    %c0_i32_0 = arith.constant 0 : i32
    %c0_i32_1 = arith.constant 0 : i32
    return %c0_i32, %c0_i32_0 : i32, i32
  }
  func.func @transform_6(%arg0: i32) -> (i32, i32) {
    %c0_i32 = arith.constant 0 : i32
    %c0_i32_0 = arith.constant 0 : i32
    %c0_i32_1 = arith.constant 0 : i32
    return %c0_i32, %c0_i32_0 : i32, i32
  }
  func.func @transform_7(%arg0: i32) -> (i32, i32) {
    %c0_i32 = arith.constant 0 : i32
    %c0_i32_0 = arith.constant 0 : i32
    %c0_i32_1 = arith.constant 0 : i32
    return %c0_i32, %c0_i32_0 : i32, i32
  }
  func.func @transform_8(%arg0: i32) -> (i32, i32) {
    %c0_i32 = arith.constant 0 : i32
    %c0_i32_0 = arith.constant 0 : i32
    %c0_i32_1 = arith.constant 0 : i32
    return %c0_i32, %c0_i32_0 : i32, i32
  }
  func.func @transform_9(%arg0: i32) -> (i32, i32) {
    %c0_i32 = arith.constant 0 : i32
    %c0_i32_0 = arith.constant 0 : i32
    %c0_i32_1 = arith.constant 0 : i32
    return %c0_i32, %c0_i32_0 : i32, i32
  }
  func.func @transform_10(%arg0: i32) -> (i32, i32) {
    %c0_i32 = arith.constant 0 : i32
    %c0_i32_0 = arith.constant 0 : i32
    %c0_i32_1 = arith.constant 0 : i32
    return %c0_i32, %c0_i32_0 : i32, i32
  }
  func.func @transform_11(%arg0: i32) -> (i32, i32) {
    %c0_i32 = arith.constant 0 : i32
    %c0_i32_0 = arith.constant 0 : i32
    %c0_i32_1 = arith.constant 0 : i32
    return %c0_i32, %c0_i32_0 : i32, i32
  }
  func.func @transform_12(%arg0: i32) -> (i32, i32) {
    %c0_i32 = arith.constant 0 : i32
    %c0_i32_0 = arith.constant 0 : i32
    return %arg0, %c0_i32 : i32, i32
  }
}

</mosaic_0001>

<llo_original>
// kernel: tpu_custom_call.1
$region0: #{tpu_custom_call.1}
  #allocation0 [shape = 'u32[]', space=smem, size = 0x4, offset = 0x4, fixed_abs, tag = 'smem constant byte address 0x4 - core index']
  #allocation1 [shape = 'u32[144,128]{1,0:T(1,128)}', space=vmem, size = 0x12000, scoped, tag = 'internal scratch']
  %s0 = inlined_call_operand.hbm [shape: f32[16,128], index: 0, kind: input, shape index: {}]
  %s1 = inlined_call_operand.hbm [shape: bf16[2,8,128], index: 1, kind: input, shape index: {}]
  %s2 = inlined_call_operand.hbm [shape: bf16[128,128], index: 2, kind: input, shape index: {}]
  %s3 = inlined_call_operand.vmem [shape: f32[1,128], index: 3, kind: input, shape index: {}]
  %s4 = inlined_call_operand.vmem [shape: f32[1,128], index: 4, kind: input, shape index: {}]
  %s5 = inlined_call_operand.vmem [shape: f32[1,128], index: 5, kind: input, shape index: {}]
  %s6 = inlined_call_operand.vmem [shape: f32[1,128], index: 6, kind: input, shape index: {}]
  %s7 = inlined_call_operand.vmem [shape: f32[1,128], index: 7, kind: input, shape index: {}]
  %s8 = inlined_call_operand.hbm [shape: bf16[128,128], index: 8, kind: input, shape index: {}]
  %s9 = inlined_call_operand.vmem [shape: f32[1,128], index: 9, kind: input, shape index: {}]
  %s10 = inlined_call_operand.hbm [shape: bf16[128,128], index: 10, kind: input, shape index: {}]
  %s11 = inlined_call_operand.vmem [shape: f32[1,128], index: 11, kind: input, shape index: {}]
  %s12 = inlined_call_operand.hbm [shape: f32[16,128], index: 12, kind: output, shape index: {}]
  %s13 = sld [smem:[#allocation0]]
  $region101: #{tpu_custom_call.1} parent=0
    _
  %s15 = ssub.s32 1, %s13
  %s16 = scalar_select 0, %s15, %s13
  $region1: #{tpu_custom_call.1} parent=0
    #allocation2 [shape = 'u8[8192]{0}', space=vmem, size = 0x2000, scoped, tag = 'input window, operand 0']
    #allocation3 [shape = 's32[2]{0}', space=sflag, size = 0x8, scoped, tag = 'scoped memory for tpu_custom_call.1']
    #allocation4 [shape = 's32[2]{0}', space=sflag, size = 0x8, scoped, tag = 'scoped memory for tpu_custom_call.1']
    #allocation5 [shape = 'u8[4096]{0}', space=vmem, size = 0x1000, scoped, tag = 'input window, operand 1, single buffered']
    #allocation6 [shape = 's32[1]{0}', space=sflag, size = 0x4, scoped, tag = 'scoped memory for tpu_custom_call.1']
    #allocation7 [shape = 'u8[32768]{0}', space=vmem, size = 0x8000, scoped, tag = 'input window, operand 2, single buffered']
    #allocation8 [shape = 'u8[32768]{0}', space=vmem, size = 0x8000, scoped, tag = 'input window, operand 8, single buffered']
    #allocation9 [shape = 's32[1]{0}', space=sflag, size = 0x4, scoped, tag = 'scoped memory for tpu_custom_call.1']
    #allocation10 [shape = 'u8[32768]{0}', space=vmem, size = 0x8000, scoped, tag = 'input window, operand 10, single buffered']
    #allocation11 [shape = 'u8[8192]{0}', space=vmem, size = 0x2000, scoped, tag = 'output window, operand 0']
    %17 = vsyncpa [#allocation3], 0
    %s18 = scalar_lea.sflag [#allocation3], 1
    %19 = vsyncpa %s18, 0
    %20 = vsyncpa [#allocation6], 0
    %21 = vsyncpa [#allocation9], 0
    %22 = vsyncpa [#allocation4], 0
    %s23 = scalar_lea.sflag [#allocation4], 1
    %24 = vsyncpa %s23, 0
    loop: start=0, step=1, limit=4
    $region2: #{tpu_custom_call.1} parent=1 // loop_pre_header
      _
    $region3: #{tpu_custom_call.1} parent=1 // loop_header
      %s26 = sphi 0, %s30
      %p27 = scmp.ge.s32.totalorder %s26, 4
      %s36 = sphi 0, %s38
      %s39 = sphi 0, %s36
      %s40 = sphi 0, %s39
      %s56 = sphi 0, %s40
      %s60 = sphi 0, %s60
      %s62 = sphi 0, %s60
      %s63 = sphi 0, %s62
      %s77 = sphi 0, %s63
      %s81 = sphi 0, %s81
      %s83 = sphi 0, %s81
      %s84 = sphi 0, %s83
      %s98 = sphi 0, %s84
      %s102 = sphi 0, %s102
      %s104 = sphi 0, %s102
      %s105 = sphi 0, %s104
      %s119 = sphi 0, %s105
      %s123 = sphi 0, %s123
      %s125 = sphi 0, %s123
      %s126 = sphi 0, %s125
      %s140 = sphi 0, %s126
      %s144 = sphi 0, %s144
      %s146 = sphi 0, %s144
      %s147 = sphi 0, %s146
      %s161 = sphi 0, %s147
      %s165 = sphi 0, %s165
      %s167 = sphi 0, %s165
      %s168 = sphi 0, %s167
      %s182 = sphi 0, %s168
      %s186 = sphi 0, %s186
      %s188 = sphi 0, %s186
      %s189 = sphi 0, %s188
      %s203 = sphi 0, %s189
      %s207 = sphi 0, %s207
      %s209 = sphi 0, %s207
      %s210 = sphi 0, %s209
      %s224 = sphi 0, %s210
      %s228 = sphi 0, %s228
      %s230 = sphi 0, %s228
      %s231 = sphi 0, %s230
      %s245 = sphi 0, %s231
      %s249 = sphi 0, %s249
      %s251 = sphi 0, %s249
      %s252 = sphi 0, %s251
      %s266 = sphi 0, %s252
      %s270 = sphi 0, %s270
      %s272 = sphi 0, %s270
      %s273 = sphi 0, %s272
      %s287 = sphi 0, %s273
      %s293 = sphi 0, %s295
      %s296 = sphi 0, %s293
      %s297 = sphi 0, %s296
      %s313 = sphi 0, %s297
    $region4: #{tpu_custom_call.1} parent=1 // loop_header_branch
      %29 = sbr.rel (%p27) target = $region8
    $region5: #{tpu_custom_call.1} parent=1 // loop_body
      %s31 = ssub.s32 %s26, 1
      %s32 = ssub.s32 %s26, 2
      %s33 = sadd.s32 %s26, 1
      %s34 = ssub.s32 %s26, %s33
      %p35 = scmp.eq.s32.totalorder %s34, 0
      %s37 = sadd.s32 %s36, 1
      %s38 = scalar_select %p35, %s36, %s37
      %p41 = pneg %p35
      %p42 = scmp.eq.s32.totalorder %s26, 1
      %p43 = por %p41, %p42
      %p44 = scmp.ne.s32.totalorder %s36, %s39
      %p45 = scmp.eq.s32.totalorder %s26, 0
      %p46 = por %p44, %p45
      %p47 = scmp.ne.s32.totalorder %s36, %s39
      %p48 = scmp.eq.s32.totalorder %s31, 1
      %p49 = por %p47, %p48
      %p50 = scmp.ne.s32.totalorder %s39, %s40
      %p51 = scmp.eq.s32.totalorder %s31, 0
      %p52 = por %p50, %p51
      %p53 = scmp.ne.s32.totalorder %s39, %s40
      %p54 = scmp.eq.s32.totalorder %s32, 1
      %p55 = por %p53, %p54
      %p57 = scmp.ne.s32.totalorder %s40, %s56
      %p58 = scmp.eq.s32.totalorder %s32, 0
      %p59 = por %p57, %p58
      %s61 = sadd.s32 %s60, 1
      %p64 = scmp.eq.s32.totalorder %s26, 1
      %p65 = scmp.ne.s32.totalorder %s60, %s62
      %p66 = scmp.eq.s32.totalorder %s26, 0
      %p67 = por %p65, %p66
      %p68 = scmp.ne.s32.totalorder %s60, %s62
      %p69 = scmp.eq.s32.totalorder %s31, 1
      %p70 = por %p68, %p69
      %p71 = scmp.ne.s32.totalorder %s62, %s63
      %p72 = scmp.eq.s32.totalorder %s31, 0
      %p73 = por %p71, %p72
      %p74 = scmp.ne.s32.totalorder %s62, %s63
      %p75 = scmp.eq.s32.totalorder %s32, 1
      %p76 = por %p74, %p75
      %p78 = scmp.ne.s32.totalorder %s63, %s77
      %p79 = scmp.eq.s32.totalorder %s32, 0
      %p80 = por %p78, %p79
      %s82 = sadd.s32 %s81, 1
      %p85 = scmp.eq.s32.totalorder %s26, 1
      %p86 = scmp.ne.s32.totalorder %s81, %s83
      %p87 = scmp.eq.s32.totalorder %s26, 0
      %p88 = por %p86, %p87
      %p89 = scmp.ne.s32.totalorder %s81, %s83
      %p90 = scmp.eq.s32.totalorder %s31, 1
      %p91 = por %p89, %p90
      %p92 = scmp.ne.s32.totalorder %s83, %s84
      %p93 = scmp.eq.s32.totalorder %s31, 0
      %p94 = por %p92, %p93
      %p95 = scmp.ne.s32.totalorder %s83, %s84
      %p96 = scmp.eq.s32.totalorder %s32, 1
      %p97 = por %p95, %p96
      %p99 = scmp.ne.s32.totalorder %s84, %s98
      %p100 = scmp.eq.s32.totalorder %s32, 0
      %p101 = por %p99, %p100
      %s103 = sadd.s32 %s102, 1
      %p106 = scmp.eq.s32.totalorder %s26, 1
      %p107 = scmp.ne.s32.totalorder %s102, %s104
      %p108 = scmp.eq.s32.totalorder %s26, 0
      %p109 = por %p107, %p108
      %p110 = scmp.ne.s32.totalorder %s102, %s104
      %p111 = scmp.eq.s32.totalorder %s31, 1
      %p112 = por %p110, %p111
      %p113 = scmp.ne.s32.totalorder %s104, %s105
      %p114 = scmp.eq.s32.totalorder %s31, 0
      %p115 = por %p113, %p114
      %p116 = scmp.ne.s32.totalorder %s104, %s105
      %p117 = scmp.eq.s32.totalorder %s32, 1
      %p118 = por %p116, %p117
      %p120 = scmp.ne.s32.totalorder %s105, %s119
      %p121 = scmp.eq.s32.totalorder %s32, 0
      %p122 = por %p120, %p121
      %s124 = sadd.s32 %s123, 1
      %p127 = scmp.eq.s32.totalorder %s26, 1
      %p128 = scmp.ne.s32.totalorder %s123, %s125
      %p129 = scmp.eq.s32.totalorder %s26, 0
      %p130 = por %p128, %p129
      %p131 = scmp.ne.s32.totalorder %s123, %s125
      %p132 = scmp.eq.s32.totalorder %s31, 1
      %p133 = por %p131, %p132
      %p134 = scmp.ne.s32.totalorder %s125, %s126
      %p135 = scmp.eq.s32.totalorder %s31, 0
      %p136 = por %p134, %p135
      %p137 = scmp.ne.s32.totalorder %s125, %s126
      %p138 = scmp.eq.s32.totalorder %s32, 1
      %p139 = por %p137, %p138
      %p141 = scmp.ne.s32.totalorder %s126, %s140
      %p142 = scmp.eq.s32.totalorder %s32, 0
      %p143 = por %p141, %p142
      %s145 = sadd.s32 %s144, 1
      %p148 = scmp.eq.s32.totalorder %s26, 1
      %p149 = scmp.ne.s32.totalorder %s144, %s146
      %p150 = scmp.eq.s32.totalorder %s26, 0
      %p151 = por %p149, %p150
      %p152 = scmp.ne.s32.totalorder %s144, %s146
      %p153 = scmp.eq.s32.totalorder %s31, 1
      %p154 = por %p152, %p153
      %p155 = scmp.ne.s32.totalorder %s146, %s147
      %p156 = scmp.eq.s32.totalorder %s31, 0
      %p157 = por %p155, %p156
      %p158 = scmp.ne.s32.totalorder %s146, %s147
      %p159 = scmp.eq.s32.totalorder %s32, 1
      %p160 = por %p158, %p159
      %p162 = scmp.ne.s32.totalorder %s147, %s161
      %p163 = scmp.eq.s32.totalorder %s32, 0
      %p164 = por %p162, %p163
      %s166 = sadd.s32 %s165, 1
      %p169 = scmp.eq.s32.totalorder %s26, 1
      %p170 = scmp.ne.s32.totalorder %s165, %s167
      %p171 = scmp.eq.s32.totalorder %s26, 0
      %p172 = por %p170, %p171
      %p173 = scmp.ne.s32.totalorder %s165, %s167
      %p174 = scmp.eq.s32.totalorder %s31, 1
      %p175 = por %p173, %p174
      %p176 = scmp.ne.s32.totalorder %s167, %s168
      %p177 = scmp.eq.s32.totalorder %s31, 0
      %p178 = por %p176, %p177
      %p179 = scmp.ne.s32.totalorder %s167, %s168
      %p180 = scmp.eq.s32.totalorder %s32, 1
      %p181 = por %p179, %p180
      %p183 = scmp.ne.s32.totalorder %s168, %s182
      %p184 = scmp.eq.s32.totalorder %s32, 0
      %p185 = por %p183, %p184
      %s187 = sadd.s32 %s186, 1
      %p190 = scmp.eq.s32.totalorder %s26, 1
      %p191 = scmp.ne.s32.totalorder %s186, %s188
      %p192 = scmp.eq.s32.totalorder %s26, 0
      %p193 = por %p191, %p192
      %p194 = scmp.ne.s32.totalorder %s186, %s188
      %p195 = scmp.eq.s32.totalorder %s31, 1
      %p196 = por %p194, %p195
      %p197 = scmp.ne.s32.totalorder %s188, %s189
      %p198 = scmp.eq.s32.totalorder %s31, 0
      %p199 = por %p197, %p198
      %p200 = scmp.ne.s32.totalorder %s188, %s189
      %p201 = scmp.eq.s32.totalorder %s32, 1
      %p202 = por %p200, %p201
      %p204 = scmp.ne.s32.totalorder %s189, %s203
      %p205 = scmp.eq.s32.totalorder %s32, 0
      %p206 = por %p204, %p205
      %s208 = sadd.s32 %s207, 1
      %p211 = scmp.eq.s32.totalorder %s26, 1
      %p212 = scmp.ne.s32.totalorder %s207, %s209
      %p213 = scmp.eq.s32.totalorder %s26, 0
      %p214 = por %p212, %p213
      %p215 = scmp.ne.s32.totalorder %s207, %s209
      %p216 = scmp.eq.s32.totalorder %s31, 1
      %p217 = por %p215, %p216
      %p218 = scmp.ne.s32.totalorder %s209, %s210
      %p219 = scmp.eq.s32.totalorder %s31, 0
      %p220 = por %p218, %p219
      %p221 = scmp.ne.s32.totalorder %s209, %s210
      %p222 = scmp.eq.s32.totalorder %s32, 1
      %p223 = por %p221, %p222
      %p225 = scmp.ne.s32.totalorder %s210, %s224
      %p226 = scmp.eq.s32.totalorder %s32, 0
      %p227 = por %p225, %p226
      %s229 = sadd.s32 %s228, 1
      %p232 = scmp.eq.s32.totalorder %s26, 1
      %p233 = scmp.ne.s32.totalorder %s228, %s230
      %p234 = scmp.eq.s32.totalorder %s26, 0
      %p235 = por %p233, %p234
      %p236 = scmp.ne.s32.totalorder %s228, %s230
      %p237 = scmp.eq.s32.totalorder %s31, 1
      %p238 = por %p236, %p237
      %p239 = scmp.ne.s32.totalorder %s230, %s231
      %p240 = scmp.eq.s32.totalorder %s31, 0
      %p241 = por %p239, %p240
      %p242 = scmp.ne.s32.totalorder %s230, %s231
      %p243 = scmp.eq.s32.totalorder %s32, 1
      %p244 = por %p242, %p243
      %p246 = scmp.ne.s32.totalorder %s231, %s245
      %p247 = scmp.eq.s32.totalorder %s32, 0
      %p248 = por %p246, %p247
      %s250 = sadd.s32 %s249, 1
      %p253 = scmp.eq.s32.totalorder %s26, 1
      %p254 = scmp.ne.s32.totalorder %s249, %s251
      %p255 = scmp.eq.s32.totalorder %s26, 0
      %p256 = por %p254, %p255
      %p257 = scmp.ne.s32.totalorder %s249, %s251
      %p258 = scmp.eq.s32.totalorder %s31, 1
      %p259 = por %p257, %p258
      %p260 = scmp.ne.s32.totalorder %s251, %s252
      %p261 = scmp.eq.s32.totalorder %s31, 0
      %p262 = por %p260, %p261
      %p263 = scmp.ne.s32.totalorder %s251, %s252
      %p264 = scmp.eq.s32.totalorder %s32, 1
      %p265 = por %p263, %p264
      %p267 = scmp.ne.s32.totalorder %s252, %s266
      %p268 = scmp.eq.s32.totalorder %s32, 0
      %p269 = por %p267, %p268
      %s271 = sadd.s32 %s270, 1
      %p274 = scmp.eq.s32.totalorder %s26, 1
      %p275 = scmp.ne.s32.totalorder %s270, %s272
      %p276 = scmp.eq.s32.totalorder %s26, 0
      %p277 = por %p275, %p276
      %p278 = scmp.ne.s32.totalorder %s270, %s272
      %p279 = scmp.eq.s32.totalorder %s31, 1
      %p280 = por %p278, %p279
      %p281 = scmp.ne.s32.totalorder %s272, %s273
      %p282 = scmp.eq.s32.totalorder %s31, 0
      %p283 = por %p281, %p282
      %p284 = scmp.ne.s32.totalorder %s272, %s273
      %p285 = scmp.eq.s32.totalorder %s32, 1
      %p286 = por %p284, %p285
      %p288 = scmp.ne.s32.totalorder %s273, %s287
      %p289 = scmp.eq.s32.totalorder %s32, 0
      %p290 = por %p288, %p289
      %s291 = ssub.s32 %s26, %s33
      %p292 = scmp.eq.s32.totalorder %s291, 0
      %s294 = sadd.s32 %s293, 1
      %s295 = scalar_select %p292, %s293, %s294
      %p298 = pneg %p292
      %p299 = scmp.eq.s32.totalorder %s26, 1
      %p300 = por %p298, %p299
      %p301 = scmp.ne.s32.totalorder %s293, %s296
      %p302 = scmp.eq.s32.totalorder %s26, 0
      %p303 = por %p301, %p302
      %p304 = scmp.ne.s32.totalorder %s293, %s296
      %p305 = scmp.eq.s32.totalorder %s31, 1
      %p306 = por %p304, %p305
      %p307 = scmp.ne.s32.totalorder %s296, %s297
      %p308 = scmp.eq.s32.totalorder %s31, 0
      %p309 = por %p307, %p308
      %p310 = scmp.ne.s32.totalorder %s296, %s297
      %p311 = scmp.eq.s32.totalorder %s32, 1
      %p312 = por %p310, %p311
      %p314 = scmp.ne.s32.totalorder %s297, %s313
      %p315 = scmp.eq.s32.totalorder %s32, 0
      %p316 = por %p314, %p315
      %p317 = scmp.le.s32.totalorder 1, %s26
      %p318 = scmp.lt.s32.totalorder %s26, 3
      %p319 = pnand %p317, %p318
      %p320 = pneg %p319
      // Predicated region
      $region9: #{tpu_custom_call.1} parent=5 // pred_check
        _
      $region10: #{tpu_custom_call.1} parent=5 // pred_check_branch
        %322 = sbr.rel (%p319) target = $region12
      $region11: #{tpu_custom_call.1} parent=5 // pred_region
        %s323 = ssub.s32 %s26, 1
        // Predicated region
        $region13: #{tpu_custom_call.1} parent=11 // pred_check
          %p324 = pneg %p73
        $region14: #{tpu_custom_call.1} parent=11 // pred_check_branch
          %326 = sbr.rel (%p324) target = $region16
        $region15: #{tpu_custom_call.1} parent=11 // pred_region
          %s328 = ssub.s32 128, 128
          %329 = vsyncadd [#allocation6], %s328
          %s330 = sshll.u32 [#allocation5], 4
          %s331 = int_to_ptr.vmem [resolvable:$true] %s330
          %336 = dma.hbm_to_vmem [thread:$0]  %s1, 128, %s331, [#allocation6], 64, 64, 4
        $region16: #{tpu_custom_call.1} parent=11 // pred_fallthru
          _
        // Predicated region
        $region17: #{tpu_custom_call.1} parent=11 // pred_check
          %p337 = pneg %p94
        $region18: #{tpu_custom_call.1} parent=11 // pred_check_branch
          %339 = sbr.rel (%p337) target = $region20
        $region19: #{tpu_custom_call.1} parent=11 // pred_region
          %s341 = ssub.s32 1024, 1024
          %342 = vsyncadd [#allocation6], %s341
          %s343 = sshll.u32 [#allocation7], 4
          %s344 = int_to_ptr.vmem [resolvable:$true] %s343
          %349 = dma.hbm_to_vmem [thread:$0]  %s2, 1024, %s344, [#allocation6], 64, 64, 4
        $region20: #{tpu_custom_call.1} parent=11 // pred_fallthru
          _
        // Predicated region
        $region21: #{tpu_custom_call.1} parent=11 // pred_check
          %p350 = pneg %p115
        $region22: #{tpu_custom_call.1} parent=11 // pred_check_branch
          %352 = sbr.rel (%p350) target = $region24
        $region23: #{tpu_custom_call.1} parent=11 // pred_region
          _
        $region24: #{tpu_custom_call.1} parent=11 // pred_fallthru
          _
        // Predicated region
        $region25: #{tpu_custom_call.1} parent=11 // pred_check
          %p353 = pneg %p136
        $region26: #{tpu_custom_call.1} parent=11 // pred_check_branch
          %355 = sbr.rel (%p353) target = $region28
        $region27: #{tpu_custom_call.1} parent=11 // pred_region
          _
        $region28: #{tpu_custom_call.1} parent=11 // pred_fallthru
          _
        // Predicated region
        $region29: #{tpu_custom_call.1} parent=11 // pred_check
          %p356 = pneg %p157
        $region30: #{tpu_custom_call.1} parent=11 // pred_check_branch
          %358 = sbr.rel (%p356) target = $region32
        $region31: #{tpu_custom_call.1} parent=11 // pred_region
          _
        $region32: #{tpu_custom_call.1} parent=11 // pred_fallthru
          _
        // Predicated region
        $region33: #{tpu_custom_call.1} parent=11 // pred_check
          %p359 = pneg %p178
        $region34: #{tpu_custom_call.1} parent=11 // pred_check_branch
          %361 = sbr.rel (%p359) target = $region36
        $region35: #{tpu_custom_call.1} parent=11 // pred_region
          _
        $region36: #{tpu_custom_call.1} parent=11 // pred_fallthru
          _
        // Predicated region
        $region37: #{tpu_custom_call.1} parent=11 // pred_check
          %p362 = pneg %p199
        $region38: #{tpu_custom_call.1} parent=11 // pred_check_branch
          %364 = sbr.rel (%p362) target = $region40
        $region39: #{tpu_custom_call.1} parent=11 // pred_region
          _
        $region40: #{tpu_custom_call.1} parent=11 // pred_fallthru
          _
        // Predicated region
        $region41: #{tpu_custom_call.1} parent=11 // pred_check
          %p365 = pneg %p220
        $region42: #{tpu_custom_call.1} parent=11 // pred_check_branch
          %367 = sbr.rel (%p365) target = $region44
        $region43: #{tpu_custom_call.1} parent=11 // pred_region
          %s369 = ssub.s32 1024, 1024
          %370 = vsyncadd [#allocation9], %s369
          %s371 = sshll.u32 [#allocation8], 4
          %s372 = int_to_ptr.vmem [resolvable:$true] %s371
          %377 = dma.hbm_to_vmem [thread:$0]  %s8, 1024, %s372, [#allocation9], 64, 64, 4
        $region44: #{tpu_custom_call.1} parent=11 // pred_fallthru
          _
        // Predicated region
        $region45: #{tpu_custom_call.1} parent=11 // pred_check
          %p378 = pneg %p241
        $region46: #{tpu_custom_call.1} parent=11 // pred_check_branch
          %380 = sbr.rel (%p378) target = $region48
        $region47: #{tpu_custom_call.1} parent=11 // pred_region
          _
        $region48: #{tpu_custom_call.1} parent=11 // pred_fallthru
          _
        // Predicated region
        $region49: #{tpu_custom_call.1} parent=11 // pred_check
          %p381 = pneg %p262
        $region50: #{tpu_custom_call.1} parent=11 // pred_check_branch
          %383 = sbr.rel (%p381) target = $region52
        $region51: #{tpu_custom_call.1} parent=11 // pred_region
          %s385 = ssub.s32 1024, 1024
          %386 = vsyncadd [#allocation9], %s385
          %s387 = sshll.u32 [#allocation10], 4
          %s388 = int_to_ptr.vmem [resolvable:$true] %s387
          %393 = dma.hbm_to_vmem [thread:$0]  %s10, 1024, %s388, [#allocation9], 64, 64, 4
        $region52: #{tpu_custom_call.1} parent=11 // pred_fallthru
          _
        // Predicated region
        $region53: #{tpu_custom_call.1} parent=11 // pred_check
          %p394 = pneg %p283
        $region54: #{tpu_custom_call.1} parent=11 // pred_check_branch
          %396 = sbr.rel (%p394) target = $region56
        $region55: #{tpu_custom_call.1} parent=11 // pred_region
          _
        $region56: #{tpu_custom_call.1} parent=11 // pred_fallthru
          _
      $region12: #{tpu_custom_call.1} parent=5 // pred_fallthru
        _
      %p397 = scmp.lt.s32.totalorder %s26, 2
      // Predicated region
      $region57: #{tpu_custom_call.1} parent=5 // pred_check
        %p398 = pneg %p397
      $region58: #{tpu_custom_call.1} parent=5 // pred_check_branch
        %400 = sbr.rel (%p398) target = $region60
      $region59: #{tpu_custom_call.1} parent=5 // pred_region
        // Predicated region
        $region61: #{tpu_custom_call.1} parent=59 // pred_check
          %p401 = pneg %p46
        $region62: #{tpu_custom_call.1} parent=59 // pred_check_branch
          %403 = sbr.rel (%p401) target = $region64
        $region63: #{tpu_custom_call.1} parent=59 // pred_region
          %s404 = sand.u32 %s36, 1
          %s405 = scalar_lea.sflag [#allocation3], %s404
          %s406 = sand.u32 %s36, 1
          %s407 = smul.addr %s406, 8
          %s408 = scalar_lea.vmem [#allocation2], %s407
          %s410 = ssub.s32 128, 128
          %411 = vsyncadd %s405, %s410
          %s412 = smul.addr %s26, 128
          %s413 = scalar_lea.hbm %s0, %s412
          %s415 = sshll.u32 %s408, 4
          %s416 = int_to_ptr.vmem [resolvable:$true] %s415
          %418 = dma.hbm_to_vmem [thread:$0]  %s413, 128, %s416, %s405
        $region64: #{tpu_custom_call.1} parent=59 // pred_fallthru
          _
      $region60: #{tpu_custom_call.1} parent=5 // pred_fallthru
        _
      %p419 = scmp.le.s32.totalorder 1, %s26
      %p420 = scmp.lt.s32.totalorder %s26, 3
      %p421 = pnand %p419, %p420
      %p422 = pneg %p421
      // Predicated region
      $region65: #{tpu_custom_call.1} parent=5 // pred_check
        _
      $region66: #{tpu_custom_call.1} parent=5 // pred_check_branch
        %424 = sbr.rel (%p421) target = $region68
      $region67: #{tpu_custom_call.1} parent=5 // pred_region
        %s425 = ssub.s32 %s26, 1
        %s426 = sand.u32 %s39, 1
        %s427 = scalar_lea.sflag [#allocation3], %s426
        %s428 = sand.u32 %s39, 1
        %s429 = smul.addr %s428, 8
        %s430 = scalar_lea.vmem [#allocation2], %s429
        // Predicated region
        $region69: #{tpu_custom_call.1} parent=67 // pred_check
          %p431 = pneg %p52
        $region70: #{tpu_custom_call.1} parent=67 // pred_check_branch
          %433 = sbr.rel (%p431) target = $region72
        $region71: #{tpu_custom_call.1} parent=67 // pred_region
          %434 = dma.done %s427, 128
        $region72: #{tpu_custom_call.1} parent=67 // pred_fallthru
          _
        // Predicated region
        $region73: #{tpu_custom_call.1} parent=67 // pred_check
          %p435 = pneg %p73
        $region74: #{tpu_custom_call.1} parent=67 // pred_check_branch
          %437 = sbr.rel (%p435) target = $region76
        $region75: #{tpu_custom_call.1} parent=67 // pred_region
          %438 = dma.done [#allocation6], 128
        $region76: #{tpu_custom_call.1} parent=67 // pred_fallthru
          _
        // Predicated region
        $region77: #{tpu_custom_call.1} parent=67 // pred_check
          %p439 = pneg %p94
        $region78: #{tpu_custom_call.1} parent=67 // pred_check_branch
          %441 = sbr.rel (%p439) target = $region80
        $region79: #{tpu_custom_call.1} parent=67 // pred_region
          %442 = dma.done [#allocation6], 1024
        $region80: #{tpu_custom_call.1} parent=67 // pred_fallthru
          _
        // Predicated region
        $region81: #{tpu_custom_call.1} parent=67 // pred_check
          %p443 = pneg %p220
        $region82: #{tpu_custom_call.1} parent=67 // pred_check_branch
          %445 = sbr.rel (%p443) target = $region84
        $region83: #{tpu_custom_call.1} parent=67 // pred_region
          %446 = dma.done [#allocation9], 1024
        $region84: #{tpu_custom_call.1} parent=67 // pred_fallthru
          _
        // Predicated region
        $region85: #{tpu_custom_call.1} parent=67 // pred_check
          %p447 = pneg %p262
        $region86: #{tpu_custom_call.1} parent=67 // pred_check_branch
          %449 = sbr.rel (%p447) target = $region88
        $region87: #{tpu_custom_call.1} parent=67 // pred_region
          %450 = dma.done [#allocation9], 1024
        $region88: #{tpu_custom_call.1} parent=67 // pred_fallthru
          _
        %s451 = sand.u32 %s39, 1
        %s452 = scalar_lea.sflag [#allocation3], %s451
        %s453 = sand.u32 %s39, 1
        %s454 = smul.addr %s453, 8
        %s455 = scalar_lea.vmem [#allocation2], %s454
        %p456 = pneg %p52
        %p457 = pneg %p49
        %p458 = pneg %p73
        %p459 = pneg %p70
        %p460 = pneg %p94
        %p461 = pneg %p91
        %p462 = pneg %p115
        %p463 = pneg %p112
        %p464 = pneg %p136
        %p465 = pneg %p133
        %p466 = pneg %p157
        %p467 = pneg %p154
        %p468 = pneg %p178
        %p469 = pneg %p175
        %p470 = pneg %p199
        %p471 = pneg %p196
        %p472 = pneg %p220
        %p473 = pneg %p217
        %p474 = pneg %p241
        %p475 = pneg %p238
        %p476 = pneg %p262
        %p477 = pneg %p259
        %p478 = pneg %p283
        %p479 = pneg %p280
        %p480 = pneg %p309
        %p481 = pneg %p306
        %s482 = sand.u32 %s296, 1
        %s483 = scalar_lea.sflag [#allocation4], %s482
        %s484 = sand.u32 %s296, 1
        %s485 = smul.addr %s484, 8
        %s486 = scalar_lea.vmem [#allocation11], %s485
        %v488 = vld [vmem:[%s430] sm:$0xff]
        %v489 = vld [vmem:[%s4] sm:$0x1]
        %v490 = vld [vmem:[%s5] sm:$0x1]
        %491 = vadd.xlane.f32.xlu0 %v488
        %v492 = vpop.xlane.xlu0 %491
        %v493 = vmul.f32 %v492, 0.03125
        %v494 = vmul.f32 %v488, %v488
        %495 = vadd.xlane.f32.xlu0 %v494
        %v496 = vpop.xlane.xlu0 %495
        %v497 = vmul.f32 %v496, 0.03125
        %v498 = vmul.f32 %v493, %v493
        %v499 = vsub.f32 %v497, %v498
        %v500 = vsub.f32 %v488, %v493
        %v501 = vadd.f32 %v499, 1e-05
        %v502 = vrsqrt.pop %v501
        %v503 = vmul.f32 %v500, %v502
        %v505 = vlaneseq
        %v506 = vshrl.u32 %v505, 7
        %v507 = vsub.s32 0, %v506
        %v508 = vrot.slane %v489, %v507
        %v510 = vmul.f32 %v503, %v508
        %v512 = vlaneseq
        %v513 = vshrl.u32 %v512, 7
        %v514 = vsub.s32 0, %v513
        %v515 = vrot.slane %v490, %v514
        %v517 = vadd.f32 %v510, %v515
        %v518 = vld [vmem:[#allocation5] sm:$0xf]
        %v519 = vunpack.c.l.bf16 %v518
        %v520 = vadd.f32 %v519, 0.0
        %521 = vrot.lane.b32.xlu0 %v517, 1
        %v522 = vpop.permute.xlu0 %521
        %v523 = vmul.f32 %v519, %v522
        %v524 = vadd.f32 %v523, 0.0
        %s525 = scalar_lea.vmem [#allocation5], 4
        %v526 = vld [vmem:[%s525] sm:$0xf]
        %v527 = vunpack.c.l.bf16 %v526
        %v528 = vadd.f32 %v520, %v527
        %529 = vrot.lane.b32.xlu0 %v517, 2
        %v530 = vpop.permute.xlu0 %529
        %v531 = vmul.f32 %v527, %v530
        %v532 = vadd.f32 %v524, %v531
        %v533 = vsub.f32 1.0, %v528
        %v534 = vmul.f32 %v533, %v517
        %v535 = vadd.f32 %v532, %v534
        %v536 = vpack.c.bf16 %v535, %v535
        %v537 = vld [vmem:[#allocation7] sm:$0xf]
        %v538 = vld [vmem:[#allocation7 + $0x4] sm:$0xf]
        %v539 = vld [vmem:[#allocation7 + $0x8] sm:$0xf]
        %v540 = vld [vmem:[#allocation7 + $0xc] sm:$0xf]
        %v541 = vld [vmem:[#allocation7 + $0x10] sm:$0xf]
        %v542 = vld [vmem:[#allocation7 + $0x14] sm:$0xf]
        %v543 = vld [vmem:[#allocation7 + $0x18] sm:$0xf]
        %v544 = vld [vmem:[#allocation7 + $0x1c] sm:$0xf]
        %v545 = vld [vmem:[#allocation7 + $0x20] sm:$0xf]
        %v546 = vld [vmem:[#allocation7 + $0x24] sm:$0xf]
        %v547 = vld [vmem:[#allocation7 + $0x28] sm:$0xf]
        %v548 = vld [vmem:[#allocation7 + $0x2c] sm:$0xf]
        %v549 = vld [vmem:[#allocation7 + $0x30] sm:$0xf]
        %v550 = vld [vmem:[#allocation7 + $0x34] sm:$0xf]
        %v551 = vld [vmem:[#allocation7 + $0x38] sm:$0xf]
        %v552 = vld [vmem:[#allocation7 + $0x3c] sm:$0xf]
        %v553 = vld [vmem:[%s3] sm:$0x1]
        %v555 = vlaneseq
        %v556 = vshrl.u32 %v555, 7
        %v557 = vsub.s32 0, %v556
        %v558 = vrot.slane %v553, %v557
        %v576 = vunpack.c.l.b16 %v537
        %v577 = vunpack.c.l.b16 %v538
        %v578 = vunpack.c.l.b16 %v539
        %v579 = vunpack.c.l.b16 %v540
        %v580 = vunpack.c.l.b16 %v541
        %v581 = vunpack.c.l.b16 %v542
        %v582 = vunpack.c.l.b16 %v543
        %v583 = vunpack.c.l.b16 %v544
        %v584 = vunpack.c.l.b16 %v545
        %v585 = vunpack.c.l.b16 %v546
        %v586 = vunpack.c.l.b16 %v547
        %v587 = vunpack.c.l.b16 %v548
        %v588 = vunpack.c.l.b16 %v549
        %v589 = vunpack.c.l.b16 %v550
        %v590 = vunpack.c.l.b16 %v551
        %v591 = vunpack.c.l.b16 %v552
        %v592 = vpack.c.b16 %v577, %v576
        %v593 = vpack.c.b16 %v579, %v578
        %v594 = vpack.c.b16 %v581, %v580
        %v595 = vpack.c.b16 %v583, %v582
        %v596 = vpack.c.b16 %v585, %v584
        %v597 = vpack.c.b16 %v587, %v586
        %v598 = vpack.c.b16 %v589, %v588
        %v599 = vpack.c.b16 %v591, %v590
        %608 = vmatprep.subr.bf16.mxu0 0
        %609 = vmatpush1.bf16.msra.mxu0 %v599
        %610 = vmatprep.subr.bf16.mxu0 0
        %611 = vmatpush1.bf16.msra.mxu0 %v598
        %612 = vmatprep.subr.bf16.mxu0 0
        %613 = vmatpush1.bf16.msra.mxu0 %v597
        %614 = vmatprep.subr.bf16.mxu0 0
        %615 = vmatpush1.bf16.msra.mxu0 %v596
        %616 = vmatprep.subr.bf16.mxu0 0
        %617 = vmatpush1.bf16.msra.mxu0 %v595
        %618 = vmatprep.subr.bf16.mxu0 0
        %619 = vmatpush1.bf16.msra.mxu0 %v594
        %620 = vmatprep.subr.bf16.mxu0 0
        %621 = vmatpush1.bf16.msra.mxu0 %v593
        %622 = vmatprep.subr.bf16.mxu0 0
        %623 = vmatpush1.bf16.msra.mxu0 %v592
        %624 = vmatprep.subr.bf16.mxu0 0
        %625 = vmatpush2.bf16.msra.mxu0 0
        %626 = vmatprep.subr.bf16.mxu0 0
        %627 = vmatpush2.bf16.msra.mxu0 0
        %628 = vmatprep.subr.bf16.mxu0 0
        %629 = vmatpush2.bf16.msra.mxu0 0
        %630 = vmatprep.subr.bf16.mxu0 0
        %631 = vmatpush2.bf16.msra.mxu0 0
        %632 = vmatprep.subr.bf16.mxu0 0
        %633 = vmatpush2.bf16.msra.mxu0 0
        %634 = vmatprep.subr.bf16.mxu0 0
        %635 = vmatpush2.bf16.msra.mxu0 0
        %636 = vmatprep.subr.bf16.mxu0 0
        %637 = vmatpush2.bf16.msra.mxu0 0
        %638 = vmatprep.subr.bf16.mxu0 0
        %639 = vmatpush2.bf16.msra.mxu0 0
        %640 = vmatprep.mubr.bf16.mxu0 0
        %641 = vmatmul.mubr.bf16.gmra.mxu0 %v536
        %v642 = vpop.f32.mrf.mxu0
        %v643 = vadd.f32 %v558, %v642
        %v644 = vpop.f32.mrf.mxu0
        %v645 = vpop.f32.mrf.mxu0
        %v646 = vpop.f32.mrf.mxu0
        %647 = vdwg.mxu0
        %v648 = vadd.f32 %v488, %v643
        %v649 = vld [vmem:[%s6] sm:$0x1]
        %v650 = vld [vmem:[%s7] sm:$0x1]
        %651 = vadd.xlane.f32.xlu0 %v648
        %v652 = vpop.xlane.xlu0 %651
        %v653 = vmul.f32 %v652, 0.03125
        %v654 = vmul.f32 %v648, %v648
        %655 = vadd.xlane.f32.xlu0 %v654
        %v656 = vpop.xlane.xlu0 %655
        %v657 = vmul.f32 %v656, 0.03125
        %v658 = vmul.f32 %v653, %v653
        %v659 = vsub.f32 %v657, %v658
        %v660 = vsub.f32 %v648, %v653
        %v661 = vadd.f32 %v659, 1e-05
        %v662 = vrsqrt.pop %v661
        %v663 = vmul.f32 %v660, %v662
        %v665 = vlaneseq
        %v666 = vshrl.u32 %v665, 7
        %v667 = vsub.s32 0, %v666
        %v668 = vrot.slane %v649, %v667
        %v670 = vmul.f32 %v663, %v668
        %v672 = vlaneseq
        %v673 = vshrl.u32 %v672, 7
        %v674 = vsub.s32 0, %v673
        %v675 = vrot.slane %v650, %v674
        %v677 = vadd.f32 %v670, %v675
        %v678 = vpack.c.bf16 %v677, %v677
        %v679 = vld [vmem:[#allocation8] sm:$0xf]
        %v680 = vld [vmem:[#allocation8 + $0x4] sm:$0xf]
        %v681 = vld [vmem:[#allocation8 + $0x8] sm:$0xf]
        %v682 = vld [vmem:[#allocation8 + $0xc] sm:$0xf]
        %v683 = vld [vmem:[#allocation8 + $0x10] sm:$0xf]
        %v684 = vld [vmem:[#allocation8 + $0x14] sm:$0xf]
        %v685 = vld [vmem:[#allocation8 + $0x18] sm:$0xf]
        %v686 = vld [vmem:[#allocation8 + $0x1c] sm:$0xf]
        %v687 = vld [vmem:[#allocation8 + $0x20] sm:$0xf]
        %v688 = vld [vmem:[#allocation8 + $0x24] sm:$0xf]
        %v689 = vld [vmem:[#allocation8 + $0x28] sm:$0xf]
        %v690 = vld [vmem:[#allocation8 + $0x2c] sm:$0xf]
        %v691 = vld [vmem:[#allocation8 + $0x30] sm:$0xf]
        %v692 = vld [vmem:[#allocation8 + $0x34] sm:$0xf]
        %v693 = vld [vmem:[#allocation8 + $0x38] sm:$0xf]
        %v694 = vld [vmem:[#allocation8 + $0x3c] sm:$0xf]
        %v695 = vld [vmem:[%s9] sm:$0x1]
        %v697 = vlaneseq
        %v698 = vshrl.u32 %v697, 7
        %v699 = vsub.s32 0, %v698
        %v700 = vrot.slane %v695, %v699
        %v718 = vunpack.c.l.b16 %v679
        %v719 = vunpack.c.l.b16 %v680
        %v720 = vunpack.c.l.b16 %v681
        %v721 = vunpack.c.l.b16 %v682
        %v722 = vunpack.c.l.b16 %v683
        %v723 = vunpack.c.l.b16 %v684
        %v724 = vunpack.c.l.b16 %v685
        %v725 = vunpack.c.l.b16 %v686
        %v726 = vunpack.c.l.b16 %v687
        %v727 = vunpack.c.l.b16 %v688
        %v728 = vunpack.c.l.b16 %v689
        %v729 = vunpack.c.l.b16 %v690
        %v730 = vunpack.c.l.b16 %v691
        %v731 = vunpack.c.l.b16 %v692
        %v732 = vunpack.c.l.b16 %v693
        %v733 = vunpack.c.l.b16 %v694
        %v734 = vpack.c.b16 %v719, %v718
        %v735 = vpack.c.b16 %v721, %v720
        %v736 = vpack.c.b16 %v723, %v722
        %v737 = vpack.c.b16 %v725, %v724
        %v738 = vpack.c.b16 %v727, %v726
        %v739 = vpack.c.b16 %v729, %v728
        %v740 = vpack.c.b16 %v731, %v730
        %v741 = vpack.c.b16 %v733, %v732
        %750 = vmatprep.subr.bf16.mxu0 0
        %751 = vmatpush1.bf16.msra.mxu0 %v741
        %752 = vmatprep.subr.bf16.mxu0 0
        %753 = vmatpush1.bf16.msra.mxu0 %v740
        %754 = vmatprep.subr.bf16.mxu0 0
        %755 = vmatpush1.bf16.msra.mxu0 %v739
        %756 = vmatprep.subr.bf16.mxu0 0
        %757 = vmatpush1.bf16.msra.mxu0 %v738
        %758 = vmatprep.subr.bf16.mxu0 0
        %759 = vmatpush1.bf16.msra.mxu0 %v737
        %760 = vmatprep.subr.bf16.mxu0 0
        %761 = vmatpush1.bf16.msra.mxu0 %v736
        %762 = vmatprep.subr.bf16.mxu0 0
        %763 = vmatpush1.bf16.msra.mxu0 %v735
        %764 = vmatprep.subr.bf16.mxu0 0
        %765 = vmatpush1.bf16.msra.mxu0 %v734
        %766 = vmatprep.subr.bf16.mxu0 0
        %767 = vmatpush2.bf16.msra.mxu0 0
        %768 = vmatprep.subr.bf16.mxu0 0
        %769 = vmatpush2.bf16.msra.mxu0 0
        %770 = vmatprep.subr.bf16.mxu0 0
        %771 = vmatpush2.bf16.msra.mxu0 0
        %772 = vmatprep.subr.bf16.mxu0 0
        %773 = vmatpush2.bf16.msra.mxu0 0
        %774 = vmatprep.subr.bf16.mxu0 0
        %775 = vmatpush2.bf16.msra.mxu0 0
        %776 = vmatprep.subr.bf16.mxu0 0
        %777 = vmatpush2.bf16.msra.mxu0 0
        %778 = vmatprep.subr.bf16.mxu0 0
        %779 = vmatpush2.bf16.msra.mxu0 0
        %780 = vmatprep.subr.bf16.mxu0 0
        %781 = vmatpush2.bf16.msra.mxu0 0
        %782 = vmatprep.mubr.bf16.mxu0 0
        %783 = vmatmul.mubr.bf16.gmra.mxu0 %v678
        %v784 = vpop.f32.mrf.mxu0
        %v785 = vadd.f32 %v700, %v784
        %v786 = vpop.f32.mrf.mxu0
        %v787 = vpop.f32.mrf.mxu0
        %v788 = vpop.f32.mrf.mxu0
        %789 = vdwg.mxu0
        %v790 = vmul.f32 %v785, 0.5
        %v791 = vmul.f32 %v785, 0.70710677
        %vm792 = vcmp.ge.f32.partialorder %v791, 0.0
        %v793 = vsel %vm792, 1.0, -1.0
        %v794 = vand.u32 2147483647, %v791
        %v795 = vmul.f32 %v794, 0.3275911
        %v796 = vadd.f32 %v795, 1.0
        %v797 = vrcp.pop %v796
        %v798 = vmul.f32 %v797, 1.0614054
        %v799 = vadd.f32 %v798, -1.4531521
        %v800 = vmul.f32 %v797, %v799
        %v801 = vadd.f32 %v800, 1.4214138
        %v802 = vmul.f32 %v797, %v801
        %v803 = vadd.f32 %v802, -0.28449672
        %v804 = vmul.f32 %v797, %v803
        %v805 = vadd.f32 %v804, 0.2548296
        %v806 = vmul.f32 %v797, %v805
        %v807 = vsub.f32 0.0, %v794
        %v808 = vmul.f32 %v807, %v794
        %v809 = vmul.f32 %v808, 1.442695
        %v810 = vpow.pop %v809
        %v811 = vmul.f32 %v806, %v810
        %v812 = vsub.f32 1.0, %v811
        %v813 = vmul.f32 %v793, %v812
        %v814 = vadd.f32 %v813, 1.0
        %v815 = vmul.f32 %v790, %v814
        %v816 = vpack.c.bf16 %v815, %v815
        %v817 = vld [vmem:[#allocation10] sm:$0xf]
        %v818 = vld [vmem:[#allocation10 + $0x4] sm:$0xf]
        %v819 = vld [vmem:[#allocation10 + $0x8] sm:$0xf]
        %v820 = vld [vmem:[#allocation10 + $0xc] sm:$0xf]
        %v821 = vld [vmem:[#allocation10 + $0x10] sm:$0xf]
        %v822 = vld [vmem:[#allocation10 + $0x14] sm:$0xf]
        %v823 = vld [vmem:[#allocation10 + $0x18] sm:$0xf]
        %v824 = vld [vmem:[#allocation10 + $0x1c] sm:$0xf]
        %v825 = vld [vmem:[#allocation10 + $0x20] sm:$0xf]
        %v826 = vld [vmem:[#allocation10 + $0x24] sm:$0xf]
        %v827 = vld [vmem:[#allocation10 + $0x28] sm:$0xf]
        %v828 = vld [vmem:[#allocation10 + $0x2c] sm:$0xf]
        %v829 = vld [vmem:[#allocation10 + $0x30] sm:$0xf]
        %v830 = vld [vmem:[#allocation10 + $0x34] sm:$0xf]
        %v831 = vld [vmem:[#allocation10 + $0x38] sm:$0xf]
        %v832 = vld [vmem:[#allocation10 + $0x3c] sm:$0xf]
        %v833 = vld [vmem:[%s11] sm:$0x1]
        %v835 = vlaneseq
        %v836 = vshrl.u32 %v835, 7
        %v837 = vsub.s32 0, %v836
        %v838 = vrot.slane %v833, %v837
        %v856 = vunpack.c.l.b16 %v817
        %v857 = vunpack.c.l.b16 %v818
        %v858 = vunpack.c.l.b16 %v819
        %v859 = vunpack.c.l.b16 %v820
        %v860 = vunpack.c.l.b16 %v821
        %v861 = vunpack.c.l.b16 %v822
        %v862 = vunpack.c.l.b16 %v823
        %v863 = vunpack.c.l.b16 %v824
        %v864 = vunpack.c.l.b16 %v825
        %v865 = vunpack.c.l.b16 %v826
        %v866 = vunpack.c.l.b16 %v827
        %v867 = vunpack.c.l.b16 %v828
        %v868 = vunpack.c.l.b16 %v829
        %v869 = vunpack.c.l.b16 %v830
        %v870 = vunpack.c.l.b16 %v831
        %v871 = vunpack.c.l.b16 %v832
        %v872 = vpack.c.b16 %v857, %v856
        %v873 = vpack.c.b16 %v859, %v858
        %v874 = vpack.c.b16 %v861, %v860
        %v875 = vpack.c.b16 %v863, %v862
        %v876 = vpack.c.b16 %v865, %v864
        %v877 = vpack.c.b16 %v867, %v866
        %v878 = vpack.c.b16 %v869, %v868
        %v879 = vpack.c.b16 %v871, %v870
        %888 = vmatprep.subr.bf16.mxu0 0
        %889 = vmatpush1.bf16.msra.mxu0 %v879
        %890 = vmatprep.subr.bf16.mxu0 0
        %891 = vmatpush1.bf16.msra.mxu0 %v878
        %892 = vmatprep.subr.bf16.mxu0 0
        %893 = vmatpush1.bf16.msra.mxu0 %v877
        %894 = vmatprep.subr.bf16.mxu0 0
        %895 = vmatpush1.bf16.msra.mxu0 %v876
        %896 = vmatprep.subr.bf16.mxu0 0
        %897 = vmatpush1.bf16.msra.mxu0 %v875
        %898 = vmatprep.subr.bf16.mxu0 0
        %899 = vmatpush1.bf16.msra.mxu0 %v874
        %900 = vmatprep.subr.bf16.mxu0 0
        %901 = vmatpush1.bf16.msra.mxu0 %v873
        %902 = vmatprep.subr.bf16.mxu0 0
        %903 = vmatpush1.bf16.msra.mxu0 %v872
        %904 = vmatprep.subr.bf16.mxu0 0
        %905 = vmatpush2.bf16.msra.mxu0 0
        %906 = vmatprep.subr.bf16.mxu0 0
        %907 = vmatpush2.bf16.msra.mxu0 0
        %908 = vmatprep.subr.bf16.mxu0 0
        %909 = vmatpush2.bf16.msra.mxu0 0
        %910 = vmatprep.subr.bf16.mxu0 0
        %911 = vmatpush2.bf16.msra.mxu0 0
        %912 = vmatprep.subr.bf16.mxu0 0
        %913 = vmatpush2.bf16.msra.mxu0 0
        %914 = vmatprep.subr.bf16.mxu0 0
        %915 = vmatpush2.bf16.msra.mxu0 0
        %916 = vmatprep.subr.bf16.mxu0 0
        %917 = vmatpush2.bf16.msra.mxu0 0
        %918 = vmatprep.subr.bf16.mxu0 0
        %919 = vmatpush2.bf16.msra.mxu0 0
        %920 = vmatprep.mubr.bf16.mxu0 0
        %921 = vmatmul.mubr.bf16.gmra.mxu0 %v816
        %v922 = vpop.f32.mrf.mxu0
        %v923 = vadd.f32 %v838, %v922
        %v924 = vpop.f32.mrf.mxu0
        %v925 = vpop.f32.mrf.mxu0
        %v926 = vpop.f32.mrf.mxu0
        %927 = vdwg.mxu0
        %v928 = vadd.f32 %v648, %v923
        %929 = vst [vmem:[%s486] sm:$0xff] %v928
        %s930 = sand.u32 %s296, 1
        %s931 = scalar_lea.sflag [#allocation4], %s930
        %s932 = sand.u32 %s296, 1
        %s933 = smul.addr %s932, 8
        %s934 = scalar_lea.vmem [#allocation11], %s933
        // Predicated region
        $region89: #{tpu_custom_call.1} parent=67 // pred_check
          %p935 = pneg %p306
        $region90: #{tpu_custom_call.1} parent=67 // pred_check_branch
          %937 = sbr.rel (%p935) target = $region92
        $region91: #{tpu_custom_call.1} parent=67 // pred_region
          %s939 = ssub.s32 128, 128
          %940 = vsyncadd %s931, %s939
          %s941 = smul.addr %s31, 128
          %s942 = scalar_lea.hbm %s12, %s941
          %s944 = sshll.u32 %s934, 4
          %s945 = int_to_ptr.vmem [resolvable:$true] %s944
          %947 = dma.vmem_to_hbm [thread:$0]  %s945, 128, %s942, %s931
        $region92: #{tpu_custom_call.1} parent=67 // pred_fallthru
          _
      $region68: #{tpu_custom_call.1} parent=5 // pred_fallthru
        _
      %p948 = scmp.le.s32.totalorder 2, %s26
      // Predicated region
      $region93: #{tpu_custom_call.1} parent=5 // pred_check
        %p949 = pneg %p948
      $region94: #{tpu_custom_call.1} parent=5 // pred_check_branch
        %951 = sbr.rel (%p949) target = $region96
      $region95: #{tpu_custom_call.1} parent=5 // pred_region
        %s952 = ssub.s32 %s26, 2
        // Predicated region
        $region97: #{tpu_custom_call.1} parent=95 // pred_check
          %p953 = pneg %p312
        $region98: #{tpu_custom_call.1} parent=95 // pred_check_branch
          %955 = sbr.rel (%p953) target = $region100
        $region99: #{tpu_custom_call.1} parent=95 // pred_region
          %s956 = sand.u32 %s297, 1
          %s957 = scalar_lea.sflag [#allocation4], %s956
          %s958 = sand.u32 %s297, 1
          %s959 = smul.addr %s958, 8
          %s960 = scalar_lea.vmem [#allocation11], %s959
          %961 = dma.done %s957, 128
        $region100: #{tpu_custom_call.1} parent=95 // pred_fallthru
          _
      $region96: #{tpu_custom_call.1} parent=5 // pred_fallthru
        _
    $region6: #{tpu_custom_call.1} parent=1 // loop_footer
      %s30 = sadd.s32 1, %s26
    $region7: #{tpu_custom_call.1} parent=1 // loop_footer_branch
      %25 = sbr.rel target = $region3
    $region8: #{tpu_custom_call.1} parent=1 // loop_exit
      _
    %962 = vsyncpa [#allocation3], 1
    %s963 = scalar_lea.sflag [#allocation3], 1
    %964 = vsyncpa %s963, 1
    %965 = vsyncpa [#allocation6], 1
    %966 = vsyncpa [#allocation9], 1
    %967 = vsyncpa [#allocation4], 1
    %s968 = scalar_lea.sflag [#allocation4], 1
    %969 = vsyncpa %s968, 1

// kernel: tpu_custom_call.1
$region0: #{tpu_custom_call.1}
  #allocation0 [shape = 'u32[]', space=smem, size = 0x4, offset = 0x4, fixed_abs, tag = 'smem constant byte address 0x4 - core index']
  #allocation1 [shape = 'u32[144,128]{1,0:T(1,128)}', space=vmem, size = 0x12000, scoped, tag = 'internal scratch']
  %s0 = inlined_call_operand.hbm [shape: f32[16,128], index: 0, kind: input, shape index: {}]
  %s1 = inlined_call_operand.hbm [shape: bf16[2,8,128], index: 1, kind: input, shape index: {}]
  %s2 = inlined_call_operand.hbm [shape: bf16[128,128], index: 2, kind: input, shape index: {}]
  %s3 = inlined_call_operand.vmem [shape: f32[1,128], index: 3, kind: input, shape index: {}]
  %s4 = inlined_call_operand.vmem [shape: f32[1,128], index: 4, kind: input, shape index: {}]
  %s5 = inlined_call_operand.vmem [shape: f32[1,128], index: 5, kind: input, shape index: {}]
  %s6 = inlined_call_operand.vmem [shape: f32[1,128], index: 6, kind: input, shape index: {}]
  %s7 = inlined_call_operand.vmem [shape: f32[1,128], index: 7, kind: input, shape index: {}]
  %s8 = inlined_call_operand.hbm [shape: bf16[128,128], index: 8, kind: input, shape index: {}]
  %s9 = inlined_call_operand.vmem [shape: f32[1,128], index: 9, kind: input, shape index: {}]
  %s10 = inlined_call_operand.hbm [shape: bf16[128,128], index: 10, kind: input, shape index: {}]
  %s11 = inlined_call_operand.vmem [shape: f32[1,128], index: 11, kind: input, shape index: {}]
  %s12 = inlined_call_operand.hbm [shape: f32[16,128], index: 12, kind: output, shape index: {}]
  %s13 = sld [smem:[#allocation0]]
  $region101: #{tpu_custom_call.1} parent=0
    _
  %s15 = ssub.s32 1, %s13
  %s16 = scalar_select 0, %s15, %s13
  $region1: #{tpu_custom_call.1} parent=0
    #allocation2 [shape = 'u8[8192]{0}', space=vmem, size = 0x2000, scoped, tag = 'input window, operand 0']
    #allocation3 [shape = 's32[2]{0}', space=sflag, size = 0x8, scoped, tag = 'scoped memory for tpu_custom_call.1']
    #allocation4 [shape = 's32[2]{0}', space=sflag, size = 0x8, scoped, tag = 'scoped memory for tpu_custom_call.1']
    #allocation5 [shape = 'u8[4096]{0}', space=vmem, size = 0x1000, scoped, tag = 'input window, operand 1, single buffered']
    #allocation6 [shape = 's32[1]{0}', space=sflag, size = 0x4, scoped, tag = 'scoped memory for tpu_custom_call.1']
    #allocation7 [shape = 'u8[32768]{0}', space=vmem, size = 0x8000, scoped, tag = 'input window, operand 2, single buffered']
    #allocation8 [shape = 'u8[32768]{0}', space=vmem, size = 0x8000, scoped, tag = 'input window, operand 8, single buffered']
    #allocation9 [shape = 's32[1]{0}', space=sflag, size = 0x4, scoped, tag = 'scoped memory for tpu_custom_call.1']
    #allocation10 [shape = 'u8[32768]{0}', space=vmem, size = 0x8000, scoped, tag = 'input window, operand 10, single buffered']
    #allocation11 [shape = 'u8[8192]{0}', space=vmem, size = 0x2000, scoped, tag = 'output window, operand 0']
    %17 = vsyncpa [#allocation3], 0
    %s18 = scalar_lea.sflag [#allocation3], 1
    %19 = vsyncpa %s18, 0
    %20 = vsyncpa [#allocation6], 0
    %21 = vsyncpa [#allocation9], 0
    %22 = vsyncpa [#allocation4], 0
    %s23 = scalar_lea.sflag [#allocation4], 1
    %24 = vsyncpa %s23, 0
    loop: start=0, step=1, limit=4
    $region2: #{tpu_custom_call.1} parent=1 // loop_pre_header
      _
    $region3: #{tpu_custom_call.1} parent=1 // loop_header
      %s26 = sphi 0, %s30
      %p27 = scmp.ge.s32.totalorder %s26, 4
      %s36 = sphi 0, %s38
      %s39 = sphi 0, %s36
      %s40 = sphi 0, %s39
      %s56 = sphi 0, %s40
      %s60 = sphi 0, %s60
      %s62 = sphi 0, %s60
      %s63 = sphi 0, %s62
      %s77 = sphi 0, %s63
      %s81 = sphi 0, %s81
      %s83 = sphi 0, %s81
      %s84 = sphi 0, %s83
      %s98 = sphi 0, %s84
      %s102 = sphi 0, %s102
      %s104 = sphi 0, %s102
      %s105 = sphi 0, %s104
      %s119 = sphi 0, %s105
      %s123 = sphi 0, %s123
      %s125 = sphi 0, %s123
      %s126 = sphi 0, %s125
      %s140 = sphi 0, %s126
      %s144 = sphi 0, %s144
      %s146 = sphi 0, %s144
      %s147 = sphi 0, %s146
      %s161 = sphi 0, %s147
      %s165 = sphi 0, %s165
      %s167 = sphi 0, %s165
      %s168 = sphi 0, %s167
      %s182 = sphi 0, %s168
      %s186 = sphi 0, %s186
      %s188 = sphi 0, %s186
      %s189 = sphi 0, %s188
      %s203 = sphi 0, %s189
      %s207 = sphi 0, %s207
      %s209 = sphi 0, %s207
      %s210 = sphi 0, %s209
      %s224 = sphi 0, %s210
      %s228 = sphi 0, %s228
      %s230 = sphi 0, %s228
      %s231 = sphi 0, %s230
      %s245 = sphi 0, %s231
      %s249 = sphi 0, %s249
      %s251 = sphi 0, %s249
      %s252 = sphi 0, %s251
      %s266 = sphi 0, %s252
      %s270 = sphi 0, %s270
      %s272 = sphi 0, %s270
      %s273 = sphi 0, %s272
      %s287 = sphi 0, %s273
      %s293 = sphi 0, %s295
      %s296 = sphi 0, %s293
      %s297 = sphi 0, %s296
      %s313 = sphi 0, %s297
    $region4: #{tpu_custom_call.1} parent=1 // loop_header_branch
      %29 = sbr.rel (%p27) target = $region8
    $region5: #{tpu_custom_call.1} parent=1 // loop_body
      %s31 = ssub.s32 %s26, 1
      %s32 = ssub.s32 %s26, 2
      %s33 = sadd.s32 %s26, 1
      %s34 = ssub.s32 %s26, %s33
      %p35 = scmp.eq.s32.totalorder %s34, 0
      %s37 = sadd.s32 %s36, 1
      %s38 = scalar_select %p35, %s36, %s37
      %p41 = pneg %p35
      %p42 = scmp.eq.s32.totalorder %s26, 1
      %p43 = por %p41, %p42
      %p44 = scmp.ne.s32.totalorder %s36, %s39
      %p45 = scmp.eq.s32.totalorder %s26, 0
      %p46 = por %p44, %p45
      %p47 = scmp.ne.s32.totalorder %s36, %s39
      %p48 = scmp.eq.s32.totalorder %s31, 1
      %p49 = por %p47, %p48
      %p50 = scmp.ne.s32.totalorder %s39, %s40
      %p51 = scmp.eq.s32.totalorder %s31, 0
      %p52 = por %p50, %p51
      %p53 = scmp.ne.s32.totalorder %s39, %s40
      %p54 = scmp.eq.s32.totalorder %s32, 1
      %p55 = por %p53, %p54
      %p57 = scmp.ne.s32.totalorder %s40, %s56
      %p58 = scmp.eq.s32.totalorder %s32, 0
      %p59 = por %p57, %p58
      %s61 = sadd.s32 %s60, 1
      %p64 = scmp.eq.s32.totalorder %s26, 1
      %p65 = scmp.ne.s32.totalorder %s60, %s62
      %p66 = scmp.eq.s32.totalorder %s26, 0
      %p67 = por %p65, %p66
      %p68 = scmp.ne.s32.totalorder %s60, %s62
      %p69 = scmp.eq.s32.totalorder %s31, 1
      %p70 = por %p68, %p69
      %p71 = scmp.ne.s32.totalorder %s62, %s63
      %p72 = scmp.eq.s32.totalorder %s31, 0
      %p73 = por %p71, %p72
      %p74 = scmp.ne.s32.totalorder %s62, %s63
      %p75 = scmp.eq.s32.totalorder %s32, 1
      %p76 = por %p74, %p75
      %p78 = scmp.ne.s32.totalorder %s63, %s77
      %p79 = scmp.eq.s32.totalorder %s32, 0
      %p80 = por %p78, %p79
      %s82 = sadd.s32 %s81, 1
      %p85 = scmp.eq.s32.totalorder %s26, 1
      %p86 = scmp.ne.s32.totalorder %s81, %s83
      %p87 = scmp.eq.s32.totalorder %s26, 0
      %p88 = por %p86, %p87
      %p89 = scmp.ne.s32.totalorder %s81, %s83
      %p90 = scmp.eq.s32.totalorder %s31, 1
      %p91 = por %p89, %p90
      %p92 = scmp.ne.s32.totalorder %s83, %s84
      %p93 = scmp.eq.s32.totalorder %s31, 0
      %p94 = por %p92, %p93
      %p95 = scmp.ne.s32.totalorder %s83, %s84
      %p96 = scmp.eq.s32.totalorder %s32, 1
      %p97 = por %p95, %p96
      %p99 = scmp.ne.s32.totalorder %s84, %s98
      %p100 = scmp.eq.s32.totalorder %s32, 0
      %p101 = por %p99, %p100
      %s103 = sadd.s32 %s102, 1
      %p106 = scmp.eq.s32.totalorder %s26, 1
      %p107 = scmp.ne.s32.totalorder %s102, %s104
      %p108 = scmp.eq.s32.totalorder %s26, 0
      %p109 = por %p107, %p108
      %p110 = scmp.ne.s32.totalorder %s102, %s104
      %p111 = scmp.eq.s32.totalorder %s31, 1
      %p112 = por %p110, %p111
      %p113 = scmp.ne.s32.totalorder %s104, %s105
      %p114 = scmp.eq.s32.totalorder %s31, 0
      %p115 = por %p113, %p114
      %p116 = scmp.ne.s32.totalorder %s104, %s105
      %p117 = scmp.eq.s32.totalorder %s32, 1
      %p118 = por %p116, %p117
      %p120 = scmp.ne.s32.totalorder %s105, %s119
      %p121 = scmp.eq.s32.totalorder %s32, 0
      %p122 = por %p120, %p121
      %s124 = sadd.s32 %s123, 1
      %p127 = scmp.eq.s32.totalorder %s26, 1
      %p128 = scmp.ne.s32.totalorder %s123, %s125
      %p129 = scmp.eq.s32.totalorder %s26, 0
      %p130 = por %p128, %p129
      %p131 = scmp.ne.s32.totalorder %s123, %s125
      %p132 = scmp.eq.s32.totalorder %s31, 1
      %p133 = por %p131, %p132
      %p134 = scmp.ne.s32.totalorder %s125, %s126
      %p135 = scmp.eq.s32.totalorder %s31, 0
      %p136 = por %p134, %p135
      %p137 = scmp.ne.s32.totalorder %s125, %s126
      %p138 = scmp.eq.s32.totalorder %s32, 1
      %p139 = por %p137, %p138
      %p141 = scmp.ne.s32.totalorder %s126, %s140
      %p142 = scmp.eq.s32.totalorder %s32, 0
      %p143 = por %p141, %p142
      %s145 = sadd.s32 %s144, 1
      %p148 = scmp.eq.s32.totalorder %s26, 1
      %p149 = scmp.ne.s32.totalorder %s144, %s146
      %p150 = scmp.eq.s32.totalorder %s26, 0
      %p151 = por %p149, %p150
      %p152 = scmp.ne.s32.totalorder %s144, %s146
      %p153 = scmp.eq.s32.totalorder %s31, 1
      %p154 = por %p152, %p153
      %p155 = scmp.ne.s32.totalorder %s146, %s147
      %p156 = scmp.eq.s32.totalorder %s31, 0
      %p157 = por %p155, %p156
      %p158 = scmp.ne.s32.totalorder %s146, %s147
      %p159 = scmp.eq.s32.totalorder %s32, 1
      %p160 = por %p158, %p159
      %p162 = scmp.ne.s32.totalorder %s147, %s161
      %p163 = scmp.eq.s32.totalorder %s32, 0
      %p164 = por %p162, %p163
      %s166 = sadd.s32 %s165, 1
      %p169 = scmp.eq.s32.totalorder %s26, 1
      %p170 = scmp.ne.s32.totalorder %s165, %s167
      %p171 = scmp.eq.s32.totalorder %s26, 0
      %p172 = por %p170, %p171
      %p173 = scmp.ne.s32.totalorder %s165, %s167
      %p174 = scmp.eq.s32.totalorder %s31, 1
      %p175 = por %p173, %p174
      %p176 = scmp.ne.s32.totalorder %s167, %s168
      %p177 = scmp.eq.s32.totalorder %s31, 0
      %p178 = por %p176, %p177
      %p179 = scmp.ne.s32.totalorder %s167, %s168
      %p180 = scmp.eq.s32.totalorder %s32, 1
      %p181 = por %p179, %p180
      %p183 = scmp.ne.s32.totalorder %s168, %s182
      %p184 = scmp.eq.s32.totalorder %s32, 0
      %p185 = por %p183, %p184
      %s187 = sadd.s32 %s186, 1
      %p190 = scmp.eq.s32.totalorder %s26, 1
      %p191 = scmp.ne.s32.totalorder %s186, %s188
      %p192 = scmp.eq.s32.totalorder %s26, 0
      %p193 = por %p191, %p192
      %p194 = scmp.ne.s32.totalorder %s186, %s188
      %p195 = scmp.eq.s32.totalorder %s31, 1
      %p196 = por %p194, %p195
      %p197 = scmp.ne.s32.totalorder %s188, %s189
      %p198 = scmp.eq.s32.totalorder %s31, 0
      %p199 = por %p197, %p198
      %p200 = scmp.ne.s32.totalorder %s188, %s189
      %p201 = scmp.eq.s32.totalorder %s32, 1
      %p202 = por %p200, %p201
      %p204 = scmp.ne.s32.totalorder %s189, %s203
      %p205 = scmp.eq.s32.totalorder %s32, 0
      %p206 = por %p204, %p205
      %s208 = sadd.s32 %s207, 1
      %p211 = scmp.eq.s32.totalorder %s26, 1
      %p212 = scmp.ne.s32.totalorder %s207, %s209
      %p213 = scmp.eq.s32.totalorder %s26, 0
      %p214 = por %p212, %p213
      %p215 = scmp.ne.s32.totalorder %s207, %s209
      %p216 = scmp.eq.s32.totalorder %s31, 1
      %p217 = por %p215, %p216
      %p218 = scmp.ne.s32.totalorder %s209, %s210
      %p219 = scmp.eq.s32.totalorder %s31, 0
      %p220 = por %p218, %p219
      %p221 = scmp.ne.s32.totalorder %s209, %s210
      %p222 = scmp.eq.s32.totalorder %s32, 1
      %p223 = por %p221, %p222
      %p225 = scmp.ne.s32.totalorder %s210, %s224
      %p226 = scmp.eq.s32.totalorder %s32, 0
      %p227 = por %p225, %p226
      %s229 = sadd.s32 %s228, 1
      %p232 = scmp.eq.s32.totalorder %s26, 1
      %p233 = scmp.ne.s32.totalorder %s228, %s230
      %p234 = scmp.eq.s32.totalorder %s26, 0
      %p235 = por %p233, %p234
      %p236 = scmp.ne.s32.totalorder %s228, %s230
      %p237 = scmp.eq.s32.totalorder %s31, 1
      %p238 = por %p236, %p237
      %p239 = scmp.ne.s32.totalorder %s230, %s231
      %p240 = scmp.eq.s32.totalorder %s31, 0
      %p241 = por %p239, %p240
      %p242 = scmp.ne.s32.totalorder %s230, %s231
      %p243 = scmp.eq.s32.totalorder %s32, 1
      %p244 = por %p242, %p243
      %p246 = scmp.ne.s32.totalorder %s231, %s245
      %p247 = scmp.eq.s32.totalorder %s32, 0
      %p248 = por %p246, %p247
      %s250 = sadd.s32 %s249, 1
      %p253 = scmp.eq.s32.totalorder %s26, 1
      %p254 = scmp.ne.s32.totalorder %s249, %s251
      %p255 = scmp.eq.s32.totalorder %s26, 0
      %p256 = por %p254, %p255
      %p257 = scmp.ne.s32.totalorder %s249, %s251
      %p258 = scmp.eq.s32.totalorder %s31, 1
      %p259 = por %p257, %p258
      %p260 = scmp.ne.s32.totalorder %s251, %s252
      %p261 = scmp.eq.s32.totalorder %s31, 0
      %p262 = por %p260, %p261
      %p263 = scmp.ne.s32.totalorder %s251, %s252
      %p264 = scmp.eq.s32.totalorder %s32, 1
      %p265 = por %p263, %p264
      %p267 = scmp.ne.s32.totalorder %s252, %s266
      %p268 = scmp.eq.s32.totalorder %s32, 0
      %p269 = por %p267, %p268
      %s271 = sadd.s32 %s270, 1
      %p274 = scmp.eq.s32.totalorder %s26, 1
      %p275 = scmp.ne.s32.totalorder %s270, %s272
      %p276 = scmp.eq.s32.totalorder %s26, 0
      %p277 = por %p275, %p276
      %p278 = scmp.ne.s32.totalorder %s270, %s272
      %p279 = scmp.eq.s32.totalorder %s31, 1
      %p280 = por %p278, %p279
      %p281 = scmp.ne.s32.totalorder %s272, %s273
      %p282 = scmp.eq.s32.totalorder %s31, 0
      %p283 = por %p281, %p282
      %p284 = scmp.ne.s32.totalorder %s272, %s273
      %p285 = scmp.eq.s32.totalorder %s32, 1
      %p286 = por %p284, %p285
      %p288 = scmp.ne.s32.totalorder %s273, %s287
      %p289 = scmp.eq.s32.totalorder %s32, 0
      %p290 = por %p288, %p289
      %s291 = ssub.s32 %s26, %s33
      %p292 = scmp.eq.s32.totalorder %s291, 0
      %s294 = sadd.s32 %s293, 1
      %s295 = scalar_select %p292, %s293, %s294
      %p298 = pneg %p292
      %p299 = scmp.eq.s32.totalorder %s26, 1
      %p300 = por %p298, %p299
      %p301 = scmp.ne.s32.totalorder %s293, %s296
      %p302 = scmp.eq.s32.totalorder %s26, 0
      %p303 = por %p301, %p302
      %p304 = scmp.ne.s32.totalorder %s293, %s296
      %p305 = scmp.eq.s32.totalorder %s31, 1
      %p306 = por %p304, %p305
      %p307 = scmp.ne.s32.totalorder %s296, %s297
      %p308 = scmp.eq.s32.totalorder %s31, 0
      %p309 = por %p307, %p308
      %p310 = scmp.ne.s32.totalorder %s296, %s297
      %p311 = scmp.eq.s32.totalorder %s32, 1
      %p312 = por %p310, %p311
      %p314 = scmp.ne.s32.totalorder %s297, %s313
      %p315 = scmp.eq.s32.totalorder %s32, 0
      %p316 = por %p314, %p315
      %p317 = scmp.le.s32.totalorder 1, %s26
      %p318 = scmp.lt.s32.totalorder %s26, 3
      %p319 = pnand %p317, %p318
      %p320 = pneg %p319
      // Predicated region
      $region9: #{tpu_custom_call.1} parent=5 // pred_check
        _
      $region10: #{tpu_custom_call.1} parent=5 // pred_check_branch
        %322 = sbr.rel (%p319) target = $region12
      $region11: #{tpu_custom_call.1} parent=5 // pred_region
        %s323 = ssub.s32 %s26, 1
        // Predicated region
        $region13: #{tpu_custom_call.1} parent=11 // pred_check
          %p324 = pneg %p73
        $region14: #{tpu_custom_call.1} parent=11 // pred_check_branch
          %326 = sbr.rel (%p324) target = $region16
        $region15: #{tpu_custom_call.1} parent=11 // pred_region
          %s328 = ssub.s32 128, 128
          %329 = vsyncadd [#allocation6], %s328
          %s330 = sshll.u32 [#allocation5], 4
          %s331 = int_to_ptr.vmem [resolvable:$true] %s330
          %336 = dma.hbm_to_vmem [thread:$0]  %s1, 128, %s331, [#allocation6], 64, 64, 4
        $region16: #{tpu_custom_call.1} parent=11 // pred_fallthru
          _
        // Predicated region
        $region17: #{tpu_custom_call.1} parent=11 // pred_check
          %p337 = pneg %p94
        $region18: #{tpu_custom_call.1} parent=11 // pred_check_branch
          %339 = sbr.rel (%p337) target = $region20
        $region19: #{tpu_custom_call.1} parent=11 // pred_region
          %s341 = ssub.s32 1024, 1024
          %342 = vsyncadd [#allocation6], %s341
          %s343 = sshll.u32 [#allocation7], 4
          %s344 = int_to_ptr.vmem [resolvable:$true] %s343
          %349 = dma.hbm_to_vmem [thread:$0]  %s2, 1024, %s344, [#allocation6], 64, 64, 4
        $region20: #{tpu_custom_call.1} parent=11 // pred_fallthru
          _
        // Predicated region
        $region21: #{tpu_custom_call.1} parent=11 // pred_check
          %p350 = pneg %p115
        $region22: #{tpu_custom_call.1} parent=11 // pred_check_branch
          %352 = sbr.rel (%p350) target = $region24
        $region23: #{tpu_custom_call.1} parent=11 // pred_region
          _
        $region24: #{tpu_custom_call.1} parent=11 // pred_fallthru
          _
        // Predicated region
        $region25: #{tpu_custom_call.1} parent=11 // pred_check
          %p353 = pneg %p136
        $region26: #{tpu_custom_call.1} parent=11 // pred_check_branch
          %355 = sbr.rel (%p353) target = $region28
        $region27: #{tpu_custom_call.1} parent=11 // pred_region
          _
        $region28: #{tpu_custom_call.1} parent=11 // pred_fallthru
          _
        // Predicated region
        $region29: #{tpu_custom_call.1} parent=11 // pred_check
          %p356 = pneg %p157
        $region30: #{tpu_custom_call.1} parent=11 // pred_check_branch
          %358 = sbr.rel (%p356) target = $region32
        $region31: #{tpu_custom_call.1} parent=11 // pred_region
          _
        $region32: #{tpu_custom_call.1} parent=11 // pred_fallthru
          _
        // Predicated region
        $region33: #{tpu_custom_call.1} parent=11 // pred_check
          %p359 = pneg %p178
        $region34: #{tpu_custom_call.1} parent=11 // pred_check_branch
          %361 = sbr.rel (%p359) target = $region36
        $region35: #{tpu_custom_call.1} parent=11 // pred_region
          _
        $region36: #{tpu_custom_call.1} parent=11 // pred_fallthru
          _
        // Predicated region
        $region37: #{tpu_custom_call.1} parent=11 // pred_check
          %p362 = pneg %p199
        $region38: #{tpu_custom_call.1} parent=11 // pred_check_branch
          %364 = sbr.rel (%p362) target = $region40
        $region39: #{tpu_custom_call.1} parent=11 // pred_region
          _
        $region40: #{tpu_custom_call.1} parent=11 // pred_fallthru
          _
        // Predicated region
        $region41: #{tpu_custom_call.1} parent=11 // pred_check
          %p365 = pneg %p220
        $region42: #{tpu_custom_call.1} parent=11 // pred_check_branch
          %367 = sbr.rel (%p365) target = $region44
        $region43: #{tpu_custom_call.1} parent=11 // pred_region
          %s369 = ssub.s32 1024, 1024
          %370 = vsyncadd [#allocation9], %s369
          %s371 = sshll.u32 [#allocation8], 4
          %s372 = int_to_ptr.vmem [resolvable:$true] %s371
          %377 = dma.hbm_to_vmem [thread:$0]  %s8, 1024, %s372, [#allocation9], 64, 64, 4
        $region44: #{tpu_custom_call.1} parent=11 // pred_fallthru
          _
        // Predicated region
        $region45: #{tpu_custom_call.1} parent=11 // pred_check
          %p378 = pneg %p241
        $region46: #{tpu_custom_call.1} parent=11 // pred_check_branch
          %380 = sbr.rel (%p378) target = $region48
        $region47: #{tpu_custom_call.1} parent=11 // pred_region
          _
        $region48: #{tpu_custom_call.1} parent=11 // pred_fallthru
          _
        // Predicated region
        $region49: #{tpu_custom_call.1} parent=11 // pred_check
          %p381 = pneg %p262
        $region50: #{tpu_custom_call.1} parent=11 // pred_check_branch
          %383 = sbr.rel (%p381) target = $region52
        $region51: #{tpu_custom_call.1} parent=11 // pred_region
          %s385 = ssub.s32 1024, 1024
          %386 = vsyncadd [#allocation9], %s385
          %s387 = sshll.u32 [#allocation10], 4
          %s388 = int_to_ptr.vmem [resolvable:$true] %s387
          %393 = dma.hbm_to_vmem [thread:$0]  %s10, 1024, %s388, [#allocation9], 64, 64, 4
        $region52: #{tpu_custom_call.1} parent=11 // pred_fallthru
          _
        // Predicated region
        $region53: #{tpu_custom_call.1} parent=11 // pred_check
          %p394 = pneg %p283
        $region54: #{tpu_custom_call.1} parent=11 // pred_check_branch
          %396 = sbr.rel (%p394) target = $region56
        $region55: #{tpu_custom_call.1} parent=11 // pred_region
          _
        $region56: #{tpu_custom_call.1} parent=11 // pred_fallthru
          _
      $region12: #{tpu_custom_call.1} parent=5 // pred_fallthru
        _
      %p397 = scmp.lt.s32.totalorder %s26, 2
      // Predicated region
      $region57: #{tpu_custom_call.1} parent=5 // pred_check
        %p398 = pneg %p397
      $region58: #{tpu_custom_call.1} parent=5 // pred_check_branch
        %400 = sbr.rel (%p398) target = $region60
      $region59: #{tpu_custom_call.1} parent=5 // pred_region
        // Predicated region
        $region61: #{tpu_custom_call.1} parent=59 // pred_check
          %p401 = pneg %p46
        $region62: #{tpu_custom_call.1} parent=59 // pred_check_branch
          %403 = sbr.rel (%p401) target = $region64
        $region63: #{tpu_custom_call.1} parent=59 // pred_region
          %s404 = sand.u32 %s36, 1
          %s405 = scalar_lea.sflag [#allocation3], %s404
          %s406 = sand.u32 %s36, 1
          %s407 = smul.addr %s406, 8
          %s408 = scalar_lea.vmem [#allocation2], %s407
          %s410 = ssub.s32 128, 128
          %411 = vsyncadd %s405, %s410
          %s412 = smul.addr %s26, 128
          %s413 = scalar_lea.hbm %s0, %s412
          %s415 = sshll.u32 %s408, 4
          %s416 = int_to_ptr.vmem [resolvable:$true] %s415
          %418 = dma.hbm_to_vmem [thread:$0]  %s413, 128, %s416, %s405
        $region64: #{tpu_custom_call.1} parent=59 // pred_fallthru
          _
      $region60: #{tpu_custom_call.1} parent=5 // pred_fallthru
        _
      %p419 = scmp.le.s32.totalorder 1, %s26
      %p420 = scmp.lt.s32.totalorder %s26, 3
      %p421 = pnand %p419, %p420
      %p422 = pneg %p421
      // Predicated region
      $region65: #{tpu_custom_call.1} parent=5 // pred_check
        _
      $region66: #{tpu_custom_call.1} parent=5 // pred_check_branch
        %424 = sbr.rel (%p421) target = $region68
      $region67: #{tpu_custom_call.1} parent=5 // pred_region
        %s425 = ssub.s32 %s26, 1
        %s426 = sand.u32 %s39, 1
        %s427 = scalar_lea.sflag [#allocation3], %s426
        %s428 = sand.u32 %s39, 1
        %s429 = smul.addr %s428, 8
        %s430 = scalar_lea.vmem [#allocation2], %s429
        // Predicated region
        $region69: #{tpu_custom_call.1} parent=67 // pred_check
          %p431 = pneg %p52
        $region70: #{tpu_custom_call.1} parent=67 // pred_check_branch
          %433 = sbr.rel (%p431) target = $region72
        $region71: #{tpu_custom_call.1} parent=67 // pred_region
          %434 = dma.done %s427, 128
        $region72: #{tpu_custom_call.1} parent=67 // pred_fallthru
          _
        // Predicated region
        $region73: #{tpu_custom_call.1} parent=67 // pred_check
          %p435 = pneg %p73
        $region74: #{tpu_custom_call.1} parent=67 // pred_check_branch
          %437 = sbr.rel (%p435) target = $region76
        $region75: #{tpu_custom_call.1} parent=67 // pred_region
          %438 = dma.done [#allocation6], 128
        $region76: #{tpu_custom_call.1} parent=67 // pred_fallthru
          _
        // Predicated region
        $region77: #{tpu_custom_call.1} parent=67 // pred_check
          %p439 = pneg %p94
        $region78: #{tpu_custom_call.1} parent=67 // pred_check_branch
          %441 = sbr.rel (%p439) target = $region80
        $region79: #{tpu_custom_call.1} parent=67 // pred_region
          %442 = dma.done [#allocation6], 1024
        $region80: #{tpu_custom_call.1} parent=67 // pred_fallthru
          _
        // Predicated region
        $region81: #{tpu_custom_call.1} parent=67 // pred_check
          %p443 = pneg %p220
        $region82: #{tpu_custom_call.1} parent=67 // pred_check_branch
          %445 = sbr.rel (%p443) target = $region84
        $region83: #{tpu_custom_call.1} parent=67 // pred_region
          %446 = dma.done [#allocation9], 1024
        $region84: #{tpu_custom_call.1} parent=67 // pred_fallthru
          _
        // Predicated region
        $region85: #{tpu_custom_call.1} parent=67 // pred_check
          %p447 = pneg %p262
        $region86: #{tpu_custom_call.1} parent=67 // pred_check_branch
          %449 = sbr.rel (%p447) target = $region88
        $region87: #{tpu_custom_call.1} parent=67 // pred_region
          %450 = dma.done [#allocation9], 1024
        $region88: #{tpu_custom_call.1} parent=67 // pred_fallthru
          _
        %s451 = sand.u32 %s39, 1
        %s452 = scalar_lea.sflag [#allocation3], %s451
        %s453 = sand.u32 %s39, 1
        %s454 = smul.addr %s453, 8
        %s455 = scalar_lea.vmem [#allocation2], %s454
        %p456 = pneg %p52
        %p457 = pneg %p49
        %p458 = pneg %p73
        %p459 = pneg %p70
        %p460 = pneg %p94
        %p461 = pneg %p91
        %p462 = pneg %p115
        %p463 = pneg %p112
        %p464 = pneg %p136
        %p465 = pneg %p133
        %p466 = pneg %p157
        %p467 = pneg %p154
        %p468 = pneg %p178
        %p469 = pneg %p175
        %p470 = pneg %p199
        %p471 = pneg %p196
        %p472 = pneg %p220
        %p473 = pneg %p217
        %p474 = pneg %p241
        %p475 = pneg %p238
        %p476 = pneg %p262
        %p477 = pneg %p259
        %p478 = pneg %p283
        %p479 = pneg %p280
        %p480 = pneg %p309
        %p481 = pneg %p306
        %s482 = sand.u32 %s296, 1
        %s483 = scalar_lea.sflag [#allocation4], %s482
        %s484 = sand.u32 %s296, 1
        %s485 = smul.addr %s484, 8
        %s486 = scalar_lea.vmem [#allocation11], %s485
        %v488 = vld [vmem:[%s430] sm:$0xff]
        %v489 = vld [vmem:[%s4] sm:$0x1]
        %v490 = vld [vmem:[%s5] sm:$0x1]
        %491 = vadd.xlane.f32.xlu0 %v488
        %v492 = vpop.xlane.xlu0 %491
        %v493 = vmul.f32 %v492, 0.03125
        %v494 = vmul.f32 %v488, %v488
        %495 = vadd.xlane.f32.xlu0 %v494
        %v496 = vpop.xlane.xlu0 %495
        %v497 = vmul.f32 %v496, 0.03125
        %v498 = vmul.f32 %v493, %v493
        %v499 = vsub.f32 %v497, %v498
        %v500 = vsub.f32 %v488, %v493
        %v501 = vadd.f32 %v499, 1e-05
        %v502 = vrsqrt.pop %v501
        %v503 = vmul.f32 %v500, %v502
        %v505 = vlaneseq
        %v506 = vshrl.u32 %v505, 7
        %v507 = vsub.s32 0, %v506
        %v508 = vrot.slane %v489, %v507
        %v510 = vmul.f32 %v503, %v508
        %v512 = vlaneseq
        %v513 = vshrl.u32 %v512, 7
        %v514 = vsub.s32 0, %v513
        %v515 = vrot.slane %v490, %v514
        %v517 = vadd.f32 %v510, %v515
        %v518 = vld [vmem:[#allocation5] sm:$0xf]
        %v519 = vunpack.c.l.bf16 %v518
        %v520 = vadd.f32 %v519, 0.0
        %521 = vrot.lane.b32.xlu0 %v517, 1
        %v522 = vpop.permute.xlu0 %521
        %v523 = vmul.f32 %v519, %v522
        %v524 = vadd.f32 %v523, 0.0
        %s525 = scalar_lea.vmem [#allocation5], 4
        %v526 = vld [vmem:[%s525] sm:$0xf]
        %v527 = vunpack.c.l.bf16 %v526
        %v528 = vadd.f32 %v520, %v527
        %529 = vrot.lane.b32.xlu0 %v517, 2
        %v530 = vpop.permute.xlu0 %529
        %v531 = vmul.f32 %v527, %v530
        %v532 = vadd.f32 %v524, %v531
        %v533 = vsub.f32 1.0, %v528
        %v534 = vmul.f32 %v533, %v517
        %v535 = vadd.f32 %v532, %v534
        %v536 = vpack.c.bf16 %v535, %v535
        %v537 = vld [vmem:[#allocation7] sm:$0xf]
        %v538 = vld [vmem:[#allocation7 + $0x4] sm:$0xf]
        %v539 = vld [vmem:[#allocation7 + $0x8] sm:$0xf]
        %v540 = vld [vmem:[#allocation7 + $0xc] sm:$0xf]
        %v541 = vld [vmem:[#allocation7 + $0x10] sm:$0xf]
        %v542 = vld [vmem:[#allocation7 + $0x14] sm:$0xf]
        %v543 = vld [vmem:[#allocation7 + $0x18] sm:$0xf]
        %v544 = vld [vmem:[#allocation7 + $0x1c] sm:$0xf]
        %v545 = vld [vmem:[#allocation7 + $0x20] sm:$0xf]
        %v546 = vld [vmem:[#allocation7 + $0x24] sm:$0xf]
        %v547 = vld [vmem:[#allocation7 + $0x28] sm:$0xf]
        %v548 = vld [vmem:[#allocation7 + $0x2c] sm:$0xf]
        %v549 = vld [vmem:[#allocation7 + $0x30] sm:$0xf]
        %v550 = vld [vmem:[#allocation7 + $0x34] sm:$0xf]
        %v551 = vld [vmem:[#allocation7 + $0x38] sm:$0xf]
        %v552 = vld [vmem:[#allocation7 + $0x3c] sm:$0xf]
        %v553 = vld [vmem:[%s3] sm:$0x1]
        %v555 = vlaneseq
        %v556 = vshrl.u32 %v555, 7
        %v557 = vsub.s32 0, %v556
        %v558 = vrot.slane %v553, %v557
        %v576 = vunpack.c.l.b16 %v537
        %v577 = vunpack.c.l.b16 %v538
        %v578 = vunpack.c.l.b16 %v539
        %v579 = vunpack.c.l.b16 %v540
        %v580 = vunpack.c.l.b16 %v541
        %v581 = vunpack.c.l.b16 %v542
        %v582 = vunpack.c.l.b16 %v543
        %v583 = vunpack.c.l.b16 %v544
        %v584 = vunpack.c.l.b16 %v545
        %v585 = vunpack.c.l.b16 %v546
        %v586 = vunpack.c.l.b16 %v547
        %v587 = vunpack.c.l.b16 %v548
        %v588 = vunpack.c.l.b16 %v549
        %v589 = vunpack.c.l.b16 %v550
        %v590 = vunpack.c.l.b16 %v551
        %v591 = vunpack.c.l.b16 %v552
        %v592 = vpack.c.b16 %v577, %v576
        %v593 = vpack.c.b16 %v579, %v578
        %v594 = vpack.c.b16 %v581, %v580
        %v595 = vpack.c.b16 %v583, %v582
        %v596 = vpack.c.b16 %v585, %v584
        %v597 = vpack.c.b16 %v587, %v586
        %v598 = vpack.c.b16 %v589, %v588
        %v599 = vpack.c.b16 %v591, %v590
        %608 = vmatprep.subr.bf16.mxu0 0
        %609 = vmatpush1.bf16.msra.mxu0 %v599
        %610 = vmatprep.subr.bf16.mxu0 0
        %611 = vmatpush1.bf16.msra.mxu0 %v598
        %612 = vmatprep.subr.bf16.mxu0 0
        %613 = vmatpush1.bf16.msra.mxu0 %v597
        %614 = vmatprep.subr.bf16.mxu0 0
        %615 = vmatpush1.bf16.msra.mxu0 %v596
        %616 = vmatprep.subr.bf16.mxu0 0
        %617 = vmatpush1.bf16.msra.mxu0 %v595
        %618 = vmatprep.subr.bf16.mxu0 0
        %619 = vmatpush1.bf16.msra.mxu0 %v594
        %620 = vmatprep.subr.bf16.mxu0 0
        %621 = vmatpush1.bf16.msra.mxu0 %v593
        %622 = vmatprep.subr.bf16.mxu0 0
        %623 = vmatpush1.bf16.msra.mxu0 %v592
        %624 = vmatprep.subr.bf16.mxu0 0
        %625 = vmatpush2.bf16.msra.mxu0 0
        %626 = vmatprep.subr.bf16.mxu0 0
        %627 = vmatpush2.bf16.msra.mxu0 0
        %628 = vmatprep.subr.bf16.mxu0 0
        %629 = vmatpush2.bf16.msra.mxu0 0
        %630 = vmatprep.subr.bf16.mxu0 0
        %631 = vmatpush2.bf16.msra.mxu0 0
        %632 = vmatprep.subr.bf16.mxu0 0
        %633 = vmatpush2.bf16.msra.mxu0 0
        %634 = vmatprep.subr.bf16.mxu0 0
        %635 = vmatpush2.bf16.msra.mxu0 0
        %636 = vmatprep.subr.bf16.mxu0 0
        %637 = vmatpush2.bf16.msra.mxu0 0
        %638 = vmatprep.subr.bf16.mxu0 0
        %639 = vmatpush2.bf16.msra.mxu0 0
        %640 = vmatprep.mubr.bf16.mxu0 0
        %641 = vmatmul.mubr.bf16.gmra.mxu0 %v536
        %v642 = vpop.f32.mrf.mxu0
        %v643 = vadd.f32 %v558, %v642
        %v644 = vpop.f32.mrf.mxu0
        %v645 = vpop.f32.mrf.mxu0
        %v646 = vpop.f32.mrf.mxu0
        %647 = vdwg.mxu0
        %v648 = vadd.f32 %v488, %v643
        %v649 = vld [vmem:[%s6] sm:$0x1]
        %v650 = vld [vmem:[%s7] sm:$0x1]
        %651 = vadd.xlane.f32.xlu0 %v648
        %v652 = vpop.xlane.xlu0 %651
        %v653 = vmul.f32 %v652, 0.03125
        %v654 = vmul.f32 %v648, %v648
        %655 = vadd.xlane.f32.xlu0 %v654
        %v656 = vpop.xlane.xlu0 %655
        %v657 = vmul.f32 %v656, 0.03125
        %v658 = vmul.f32 %v653, %v653
        %v659 = vsub.f32 %v657, %v658
        %v660 = vsub.f32 %v648, %v653
        %v661 = vadd.f32 %v659, 1e-05
        %v662 = vrsqrt.pop %v661
        %v663 = vmul.f32 %v660, %v662
        %v665 = vlaneseq
        %v666 = vshrl.u32 %v665, 7
        %v667 = vsub.s32 0, %v666
        %v668 = vrot.slane %v649, %v667
        %v670 = vmul.f32 %v663, %v668
        %v672 = vlaneseq
        %v673 = vshrl.u32 %v672, 7
        %v674 = vsub.s32 0, %v673
        %v675 = vrot.slane %v650, %v674
        %v677 = vadd.f32 %v670, %v675
        %v678 = vpack.c.bf16 %v677, %v677
        %v679 = vld [vmem:[#allocation8] sm:$0xf]
        %v680 = vld [vmem:[#allocation8 + $0x4] sm:$0xf]
        %v681 = vld [vmem:[#allocation8 + $0x8] sm:$0xf]
        %v682 = vld [vmem:[#allocation8 + $0xc] sm:$0xf]
        %v683 = vld [vmem:[#allocation8 + $0x10] sm:$0xf]
        %v684 = vld [vmem:[#allocation8 + $0x14] sm:$0xf]
        %v685 = vld [vmem:[#allocation8 + $0x18] sm:$0xf]
        %v686 = vld [vmem:[#allocation8 + $0x1c] sm:$0xf]
        %v687 = vld [vmem:[#allocation8 + $0x20] sm:$0xf]
        %v688 = vld [vmem:[#allocation8 + $0x24] sm:$0xf]
        %v689 = vld [vmem:[#allocation8 + $0x28] sm:$0xf]
        %v690 = vld [vmem:[#allocation8 + $0x2c] sm:$0xf]
        %v691 = vld [vmem:[#allocation8 + $0x30] sm:$0xf]
        %v692 = vld [vmem:[#allocation8 + $0x34] sm:$0xf]
        %v693 = vld [vmem:[#allocation8 + $0x38] sm:$0xf]
        %v694 = vld [vmem:[#allocation8 + $0x3c] sm:$0xf]
        %v695 = vld [vmem:[%s9] sm:$0x1]
        %v697 = vlaneseq
        %v698 = vshrl.u32 %v697, 7
        %v699 = vsub.s32 0, %v698
        %v700 = vrot.slane %v695, %v699
        %v718 = vunpack.c.l.b16 %v679
        %v719 = vunpack.c.l.b16 %v680
        %v720 = vunpack.c.l.b16 %v681
        %v721 = vunpack.c.l.b16 %v682
        %v722 = vunpack.c.l.b16 %v683
        %v723 = vunpack.c.l.b16 %v684
        %v724 = vunpack.c.l.b16 %v685
        %v725 = vunpack.c.l.b16 %v686
        %v726 = vunpack.c.l.b16 %v687
        %v727 = vunpack.c.l.b16 %v688
        %v728 = vunpack.c.l.b16 %v689
        %v729 = vunpack.c.l.b16 %v690
        %v730 = vunpack.c.l.b16 %v691
        %v731 = vunpack.c.l.b16 %v692
        %v732 = vunpack.c.l.b16 %v693
        %v733 = vunpack.c.l.b16 %v694
        %v734 = vpack.c.b16 %v719, %v718
        %v735 = vpack.c.b16 %v721, %v720
        %v736 = vpack.c.b16 %v723, %v722
        %v737 = vpack.c.b16 %v725, %v724
        %v738 = vpack.c.b16 %v727, %v726
        %v739 = vpack.c.b16 %v729, %v728
        %v740 = vpack.c.b16 %v731, %v730
        %v741 = vpack.c.b16 %v733, %v732
        %750 = vmatprep.subr.bf16.mxu0 0
        %751 = vmatpush1.bf16.msra.mxu0 %v741
        %752 = vmatprep.subr.bf16.mxu0 0
        %753 = vmatpush1.bf16.msra.mxu0 %v740
        %754 = vmatprep.subr.bf16.mxu0 0
        %755 = vmatpush1.bf16.msra.mxu0 %v739
        %756 = vmatprep.subr.bf16.mxu0 0
        %757 = vmatpush1.bf16.msra.mxu0 %v738
        %758 = vmatprep.subr.bf16.mxu0 0
        %759 = vmatpush1.bf16.msra.mxu0 %v737
        %760 = vmatprep.subr.bf16.mxu0 0
        %761 = vmatpush1.bf16.msra.mxu0 %v736
        %762 = vmatprep.subr.bf16.mxu0 0
        %763 = vmatpush1.bf16.msra.mxu0 %v735
        %764 = vmatprep.subr.bf16.mxu0 0
        %765 = vmatpush1.bf16.msra.mxu0 %v734
        %766 = vmatprep.subr.bf16.mxu0 0
        %767 = vmatpush2.bf16.msra.mxu0 0
        %768 = vmatprep.subr.bf16.mxu0 0
        %769 = vmatpush2.bf16.msra.mxu0 0
        %770 = vmatprep.subr.bf16.mxu0 0
        %771 = vmatpush2.bf16.msra.mxu0 0
        %772 = vmatprep.subr.bf16.mxu0 0
        %773 = vmatpush2.bf16.msra.mxu0 0
        %774 = vmatprep.subr.bf16.mxu0 0
        %775 = vmatpush2.bf16.msra.mxu0 0
        %776 = vmatprep.subr.bf16.mxu0 0
        %777 = vmatpush2.bf16.msra.mxu0 0
        %778 = vmatprep.subr.bf16.mxu0 0
        %779 = vmatpush2.bf16.msra.mxu0 0
        %780 = vmatprep.subr.bf16.mxu0 0
        %781 = vmatpush2.bf16.msra.mxu0 0
        %782 = vmatprep.mubr.bf16.mxu0 0
        %783 = vmatmul.mubr.bf16.gmra.mxu0 %v678
        %v784 = vpop.f32.mrf.mxu0
        %v785 = vadd.f32 %v700, %v784
        %v786 = vpop.f32.mrf.mxu0
        %v787 = vpop.f32.mrf.mxu0
        %v788 = vpop.f32.mrf.mxu0
        %789 = vdwg.mxu0
        %v790 = vmul.f32 %v785, 0.5
        %v791 = vmul.f32 %v785, 0.70710677
        %vm792 = vcmp.ge.f32.partialorder %v791, 0.0
        %v793 = vsel %vm792, 1.0, -1.0
        %v794 = vand.u32 2147483647, %v791
        %v795 = vmul.f32 %v794, 0.3275911
        %v796 = vadd.f32 %v795, 1.0
        %v797 = vrcp.pop %v796
        %v798 = vmul.f32 %v797, 1.0614054
        %v799 = vadd.f32 %v798, -1.4531521
        %v800 = vmul.f32 %v797, %v799
        %v801 = vadd.f32 %v800, 1.4214138
        %v802 = vmul.f32 %v797, %v801
        %v803 = vadd.f32 %v802, -0.28449672
        %v804 = vmul.f32 %v797, %v803
        %v805 = vadd.f32 %v804, 0.2548296
        %v806 = vmul.f32 %v797, %v805
        %v807 = vsub.f32 0.0, %v794
        %v808 = vmul.f32 %v807, %v794
        %v809 = vmul.f32 %v808, 1.442695
        %v810 = vpow.pop %v809
        %v811 = vmul.f32 %v806, %v810
        %v812 = vsub.f32 1.0, %v811
        %v813 = vmul.f32 %v793, %v812
        %v814 = vadd.f32 %v813, 1.0
        %v815 = vmul.f32 %v790, %v814
        %v816 = vpack.c.bf16 %v815, %v815
        %v817 = vld [vmem:[#allocation10] sm:$0xf]
        %v818 = vld [vmem:[#allocation10 + $0x4] sm:$0xf]
        %v819 = vld [vmem:[#allocation10 + $0x8] sm:$0xf]
        %v820 = vld [vmem:[#allocation10 + $0xc] sm:$0xf]
        %v821 = vld [vmem:[#allocation10 + $0x10] sm:$0xf]
        %v822 = vld [vmem:[#allocation10 + $0x14] sm:$0xf]
        %v823 = vld [vmem:[#allocation10 + $0x18] sm:$0xf]
        %v824 = vld [vmem:[#allocation10 + $0x1c] sm:$0xf]
        %v825 = vld [vmem:[#allocation10 + $0x20] sm:$0xf]
        %v826 = vld [vmem:[#allocation10 + $0x24] sm:$0xf]
        %v827 = vld [vmem:[#allocation10 + $0x28] sm:$0xf]
        %v828 = vld [vmem:[#allocation10 + $0x2c] sm:$0xf]
        %v829 = vld [vmem:[#allocation10 + $0x30] sm:$0xf]
        %v830 = vld [vmem:[#allocation10 + $0x34] sm:$0xf]
        %v831 = vld [vmem:[#allocation10 + $0x38] sm:$0xf]
        %v832 = vld [vmem:[#allocation10 + $0x3c] sm:$0xf]
        %v833 = vld [vmem:[%s11] sm:$0x1]
        %v835 = vlaneseq
        %v836 = vshrl.u32 %v835, 7
        %v837 = vsub.s32 0, %v836
        %v838 = vrot.slane %v833, %v837
        %v856 = vunpack.c.l.b16 %v817
        %v857 = vunpack.c.l.b16 %v818
        %v858 = vunpack.c.l.b16 %v819
        %v859 = vunpack.c.l.b16 %v820
        %v860 = vunpack.c.l.b16 %v821
        %v861 = vunpack.c.l.b16 %v822
        %v862 = vunpack.c.l.b16 %v823
        %v863 = vunpack.c.l.b16 %v824
        %v864 = vunpack.c.l.b16 %v825
        %v865 = vunpack.c.l.b16 %v826
        %v866 = vunpack.c.l.b16 %v827
        %v867 = vunpack.c.l.b16 %v828
        %v868 = vunpack.c.l.b16 %v829
        %v869 = vunpack.c.l.b16 %v830
        %v870 = vunpack.c.l.b16 %v831
        %v871 = vunpack.c.l.b16 %v832
        %v872 = vpack.c.b16 %v857, %v856
        %v873 = vpack.c.b16 %v859, %v858
        %v874 = vpack.c.b16 %v861, %v860
        %v875 = vpack.c.b16 %v863, %v862
        %v876 = vpack.c.b16 %v865, %v864
        %v877 = vpack.c.b16 %v867, %v866
        %v878 = vpack.c.b16 %v869, %v868
        %v879 = vpack.c.b16 %v871, %v870
        %888 = vmatprep.subr.bf16.mxu0 0
        %889 = vmatpush1.bf16.msra.mxu0 %v879
        %890 = vmatprep.subr.bf16.mxu0 0
        %891 = vmatpush1.bf16.msra.mxu0 %v878
        %892 = vmatprep.subr.bf16.mxu0 0
        %893 = vmatpush1.bf16.msra.mxu0 %v877
        %894 = vmatprep.subr.bf16.mxu0 0
        %895 = vmatpush1.bf16.msra.mxu0 %v876
        %896 = vmatprep.subr.bf16.mxu0 0
        %897 = vmatpush1.bf16.msra.mxu0 %v875
        %898 = vmatprep.subr.bf16.mxu0 0
        %899 = vmatpush1.bf16.msra.mxu0 %v874
        %900 = vmatprep.subr.bf16.mxu0 0
        %901 = vmatpush1.bf16.msra.mxu0 %v873
        %902 = vmatprep.subr.bf16.mxu0 0
        %903 = vmatpush1.bf16.msra.mxu0 %v872
        %904 = vmatprep.subr.bf16.mxu0 0
        %905 = vmatpush2.bf16.msra.mxu0 0
        %906 = vmatprep.subr.bf16.mxu0 0
        %907 = vmatpush2.bf16.msra.mxu0 0
        %908 = vmatprep.subr.bf16.mxu0 0
        %909 = vmatpush2.bf16.msra.mxu0 0
        %910 = vmatprep.subr.bf16.mxu0 0
        %911 = vmatpush2.bf16.msra.mxu0 0
        %912 = vmatprep.subr.bf16.mxu0 0
        %913 = vmatpush2.bf16.msra.mxu0 0
        %914 = vmatprep.subr.bf16.mxu0 0
        %915 = vmatpush2.bf16.msra.mxu0 0
        %916 = vmatprep.subr.bf16.mxu0 0
        %917 = vmatpush2.bf16.msra.mxu0 0
        %918 = vmatprep.subr.bf16.mxu0 0
        %919 = vmatpush2.bf16.msra.mxu0 0
        %920 = vmatprep.mubr.bf16.mxu0 0
        %921 = vmatmul.mubr.bf16.gmra.mxu0 %v816
        %v922 = vpop.f32.mrf.mxu0
        %v923 = vadd.f32 %v838, %v922
        %v924 = vpop.f32.mrf.mxu0
        %v925 = vpop.f32.mrf.mxu0
        %v926 = vpop.f32.mrf.mxu0
        %927 = vdwg.mxu0
        %v928 = vadd.f32 %v648, %v923
        %929 = vst [vmem:[%s486] sm:$0xff] %v928
        %s930 = sand.u32 %s296, 1
        %s931 = scalar_lea.sflag [#allocation4], %s930
        %s932 = sand.u32 %s296, 1
        %s933 = smul.addr %s932, 8
        %s934 = scalar_lea.vmem [#allocation11], %s933
        // Predicated region
        $region89: #{tpu_custom_call.1} parent=67 // pred_check
          %p935 = pneg %p306
        $region90: #{tpu_custom_call.1} parent=67 // pred_check_branch
          %937 = sbr.rel (%p935) target = $region92
        $region91: #{tpu_custom_call.1} parent=67 // pred_region
          %s939 = ssub.s32 128, 128
          %940 = vsyncadd %s931, %s939
          %s941 = smul.addr %s31, 128
          %s942 = scalar_lea.hbm %s12, %s941
          %s944 = sshll.u32 %s934, 4
          %s945 = int_to_ptr.vmem [resolvable:$true] %s944
          %947 = dma.vmem_to_hbm [thread:$0]  %s945, 128, %s942, %s931
        $region92: #{tpu_custom_call.1} parent=67 // pred_fallthru
          _
      $region68: #{tpu_custom_call.1} parent=5 // pred_fallthru
        _
      %p948 = scmp.le.s32.totalorder 2, %s26
      // Predicated region
      $region93: #{tpu_custom_call.1} parent=5 // pred_check
        %p949 = pneg %p948
      $region94: #{tpu_custom_call.1} parent=5 // pred_check_branch
        %951 = sbr.rel (%p949) target = $region96
      $region95: #{tpu_custom_call.1} parent=5 // pred_region
        %s952 = ssub.s32 %s26, 2
        // Predicated region
        $region97: #{tpu_custom_call.1} parent=95 // pred_check
          %p953 = pneg %p312
        $region98: #{tpu_custom_call.1} parent=95 // pred_check_branch
          %955 = sbr.rel (%p953) target = $region100
        $region99: #{tpu_custom_call.1} parent=95 // pred_region
          %s956 = sand.u32 %s297, 1
          %s957 = scalar_lea.sflag [#allocation4], %s956
          %s958 = sand.u32 %s297, 1
          %s959 = smul.addr %s958, 8
          %s960 = scalar_lea.vmem [#allocation11], %s959
          %961 = dma.done %s957, 128
        $region100: #{tpu_custom_call.1} parent=95 // pred_fallthru
          _
      $region96: #{tpu_custom_call.1} parent=5 // pred_fallthru
        _
    $region6: #{tpu_custom_call.1} parent=1 // loop_footer
      %s30 = sadd.s32 1, %s26
    $region7: #{tpu_custom_call.1} parent=1 // loop_footer_branch
      %25 = sbr.rel target = $region3
    $region8: #{tpu_custom_call.1} parent=1 // loop_exit
      _
    %962 = vsyncpa [#allocation3], 1
    %s963 = scalar_lea.sflag [#allocation3], 1
    %964 = vsyncpa %s963, 1
    %965 = vsyncpa [#allocation6], 1
    %966 = vsyncpa [#allocation9], 1
    %967 = vsyncpa [#allocation4], 1
    %s968 = scalar_lea.sflag [#allocation4], 1
    %969 = vsyncpa %s968, 1

</llo_original>
